<compile_context>
chip_gen: v5e
topology: v5e:2x2
jax: 0.10.0
libtpu: 0.0.40
codegen_flags: <defaults>
</compile_context>

<pallas_src>
import math

import jax
import jax.numpy as jnp
from jax import lax
from jax.experimental import pallas as pl
from jax.experimental.pallas import tpu as pltpu

S_DIM = 16      # as in the reference script
HIDDEN = 32     # hidden_dim (small synthetic size)
N_LAYER = 4     # hidden_layer
EPS_LN = 1e-5   # torch LayerNorm default eps
EPS_BN = 1e-5   # torch BatchNorm1d default eps
EPS_SM = 1e-15  # masked_softmax epsilon


def msnet_kernel(a_ref, b_ref, p_ref, dist_ref, mavg_ref, fw_ref, aff_ref,
                 wy_ref, tail_ref, out_ref):
    f32 = jnp.float32
    bf16 = jnp.bfloat16

    tb, feat = p_ref.shape                 # feat = N_LAYER * HIDDEN = 128
    rows = a_ref.shape[0]                  # tb * seq
    seq = rows // tb
    hid = feat // N_LAYER
    b2 = 2 * tb
    n2 = 2 * rows
    # group-average -> group-sum / sqrt(hid)  (attention score rescale)
    score_scale = float(hid) / math.sqrt(hid)

    m_avg = mavg_ref[...]                  # (feat, feat) bf16 block-avg matrix

    # ---- stack a and b: LN / softmax / pooling run once per grid step ------
    x_bf = jnp.concatenate([a_ref[...], b_ref[...]], axis=0)     # (n2, feat)
    x_f = x_bf.astype(f32)
    x3 = x_f.reshape(b2, seq, feat)

    # ---- sequence masks (torch get_mask) from the already-resident tiles ---
    nz = jnp.sum((x3 != 0.0).astype(f32), axis=-1)               # (b2, seq)
    bad = (nz == 0.0).astype(f32)
    s_row = lax.broadcasted_iota(jnp.int32, (seq, seq), 0)
    s_col = lax.broadcasted_iota(jnp.int32, (seq, seq), 1)
    prefix = (s_row <= s_col).astype(f32)                        # (seq, seq)
    seen = jnp.dot(bad, prefix, preferred_element_type=f32)      # #bad rows <= s
    mask = (seen == 0.0).astype(f32)                             # (b2, seq)

    # ---- grouped LayerNorm (per 32-lane layer group) -----------------------
    # reduce + broadcast folded into one 128-wide matmul; bf16 MXU operands,
    # f32 accumulation, f32 centering / variance / rsqrt epilogue.
    mean_b = jnp.dot(x_bf, m_avg, preferred_element_type=f32)    # (n2, feat)
    xc = x_f - mean_b
    var_b = jnp.dot((xc * xc).astype(bf16), m_avg, preferred_element_type=f32)
    xl = xc * lax.rsqrt(var_b + EPS_LN)                          # (n2, feat)
    xl3 = xl.reshape(b2, seq, feat)

    # ---- attention scores + masked softmax + pooled vectors (all layers) ---
    p_f = p_ref[...].astype(f32)                                 # (tb, feat)
    p_stack = jnp.concatenate([p_f, p_f], axis=0)                # (b2, feat)
    q = (xl3 * p_stack[:, None, :]).reshape(n2, feat)
    sc = jnp.dot(q.astype(bf16), m_avg, preferred_element_type=f32) * score_scale
    s3 = sc.reshape(b2, seq, feat)                               # score per lane
    # stable masked softmax over the sequence axis
    s3 = s3 - jnp.max(s3, axis=1, keepdims=True)
    e3 = jnp.exp(s3) * mask[:, :, None]
    denom = jnp.sum(e3, axis=1, keepdims=True) + EPS_SM
    attn = e3 * pl.reciprocal(denom, approx=True)
    pooled = jnp.sum(xl3 * attn, axis=1)                         # (b2, feat)
    a_vec = pooled[:tb]
    b_vec = pooled[tb:]

    # ---- fused ffnn of all 4 similarity layers: one K = 5*feat matmul ------
    aff = aff_ref[...]                     # (3, nf): [bias, bn_scale, bn_shift]
    cat = jnp.concatenate([p_f, a_vec, b_vec, p_f * a_vec, p_f * b_vec],
                          axis=-1)                               # (tb, 5*feat)
    y = jnp.dot(cat.astype(bf16), fw_ref[...], preferred_element_type=f32)
    y = y + aff[0:1, :]
    # BatchNorm1d (eval / running stats, pre-folded) + ReLU; dropout = identity
    y = jnp.maximum(y * aff[1:2, :] + aff[2:3, :], 0.0)

    # ---- distance encoding tanh(Linear(1,1)) + mention_score Linear(nf+2,3) -
    tail = tail_ref[...]                   # rows: w_ap, w_bp, ms_bias, [dw, db]
    d_enc = jnp.tanh(dist_ref[...] * tail[3:4, 0:1] + tail[3:4, 1:2])  # (tb, 2)
    out = jnp.dot(y, wy_ref[...], preferred_element_type=f32)
    out = out + d_enc[:, 0:1] * tail[0:1, :] + d_enc[:, 1:2] * tail[1:2, :]
    out_ref[...] = out + tail[2:3, :]


def _round_up(x, m):
    return ((x + m - 1) // m) * m


def _vmem_limit_bytes():
    """Request a generous scoped-VMEM budget (v5e default is only 16 MiB)."""
    default = 48 << 20                      # safe on every generation (v7x: 64 MiB phys)
    try:
        info_fn = getattr(pltpu, "get_tpu_info", None)
        if info_fn is None:
            return default
        cap = getattr(info_fn(), "vmem_capacity_bytes", None)
        if not cap:
            return default
        return int(min(cap * 3 // 4, 96 << 20))
    except Exception:
        return default


def msnet_forward(a, b, p, ap, bp, params, block_b=None):
    B, S, L, H = a.shape
    F = L * H
    NF = params["wy"].shape[0]

    # Batch tile: large tiles amortize the ~0.35 us/step fixed cost and grow M
    # of every MXU op.  512 fits comfortably in the 48 MiB budget we request
    # (sweep 512-2048 on v5e/v6e, which have 128 MiB physical VMEM).  bf16
    # packing wants 16-row alignment; keep >= 2 grid steps when the batch
    # allows it so both v7x TensorCores are busy.
    B_ru = _round_up(B, 16)
    if block_b is None:
        block_b = 512
    block_b = _round_up(min(block_b, B_ru), 16)
    if B_ru >= 32 and (B_ru + block_b - 1) // block_b < 2:
        block_b = _round_up((B_ru + 1) // 2, 16)
    B_pad = _round_up(B, block_b)
    tb = block_b
    pad = B_pad - B

    # Lane-dense 2D layout: (B*S, 128) bf16 slabs — no per-batch sublane
    # padding, and the in-kernel reshapes to (b, S, 128) are free.  bf16 at the
    # HBM boundary halves traffic for the dominant a/b reads (~1e-3 rel err).
    a2 = a.reshape(B * S, F).astype(jnp.bfloat16)
    b2 = b.reshape(B * S, F).astype(jnp.bfloat16)
    p2 = p.reshape(B, F).astype(jnp.bfloat16)
    dist = jnp.stack([ap, bp], axis=1).astype(jnp.float32)       # (B, 2)

    if pad:
        a2 = jnp.pad(a2, ((0, pad * S), (0, 0)))
        b2 = jnp.pad(b2, ((0, pad * S), (0, 0)))
        p2 = jnp.pad(p2, ((0, pad), (0, 0)))
        dist = jnp.pad(dist, ((0, pad), (0, 0)))

    # Host-built block-averaging matrix (per 32-lane layer group); 1/32 is
    # exactly representable in bf16.
    lane = jnp.arange(F)
    m_avg = ((lane[:, None] // H) == (lane[None, :] // H)).astype(jnp.float32) / H
    m_avg = m_avg.astype(jnp.bfloat16)

    grid = (B_pad // tb,)

    out = pl.pallas_call(
        msnet_kernel,
        out_shape=jax.ShapeDtypeStruct((B_pad, 3), jnp.float32),
        grid=grid,
        in_specs=[
            pl.BlockSpec((tb * S, F), lambda i: (i, 0)),          # a (bf16, 2D)
            pl.BlockSpec((tb * S, F), lambda i: (i, 0)),          # b (bf16, 2D)
            pl.BlockSpec((tb, F), lambda i: (i, 0)),              # p
            pl.BlockSpec((tb, 2), lambda i: (i, 0)),              # [ap, bp]
            pl.BlockSpec((F, F), lambda i: (0, 0)),               # block-avg matrix
            pl.BlockSpec((5 * F, NF), lambda i: (0, 0)),          # fused ffnn W
            pl.BlockSpec((3, NF), lambda i: (0, 0)),              # bias/BN affine
            pl.BlockSpec((NF, 3), lambda i: (0, 0)),              # mention W (y)
            pl.BlockSpec((4, 3), lambda i: (0, 0)),               # small tail
        ],
        out_specs=pl.BlockSpec((tb, 3), lambda i: (i, 0)),
        compiler_params=pltpu.CompilerParams(
            dimension_semantics=("parallel",),                    # v7x: 2 TCs
            vmem_limit_bytes=_vmem_limit_bytes()),
    )(a2, b2, p2, dist, m_avg, params["fw"], params["aff"], params["wy"],
      params["tail"])
    return out[:B]


def init_params(key, hidden_dim=HIDDEN, hidden_layer=N_LAYER):
    keys = jax.random.split(key, 10)
    fan_in = 5 * hidden_dim
    nf = S_DIM * hidden_layer
    f_dim = hidden_layer * hidden_dim

    # per-layer ffnn: Linear(5H, S_DIM) with kaiming-normal weight, uniform bias
    w = jax.random.normal(keys[0], (hidden_layer, S_DIM, fan_in),
                          jnp.float32) * math.sqrt(2.0 / fan_in)
    fb = ((jax.random.uniform(keys[1], (hidden_layer, S_DIM), jnp.float32)
           - 0.5) * 2.0 / math.sqrt(fan_in))

    # Fuse the 4 per-layer Linear(5H,16) into ONE (5*L*H, L*16) matrix whose
    # row blocks line up with the in-kernel lane concat [p, a, b, p*a, p*b].
    fw = jnp.zeros((5, f_dim, nf), jnp.float32)
    for l in range(hidden_layer):
        for j in range(5):
            blk = jnp.transpose(w[l, :, j * hidden_dim:(j + 1) * hidden_dim])
            fw = fw.at[j,
                       l * hidden_dim:(l + 1) * hidden_dim,
                       l * S_DIM:(l + 1) * S_DIM].set(blk)
    fw = fw.reshape(5 * f_dim, nf).astype(jnp.bfloat16)

    # BatchNorm1d running stats, folded to scale/shift (eval mode)
    bn_g = 1.0 + 0.1 * jax.random.normal(keys[2], (nf,), jnp.float32)
    bn_b = 0.1 * jax.random.normal(keys[3], (nf,), jnp.float32)
    bn_m = 0.05 * jax.random.normal(keys[4], (nf,), jnp.float32)
    bn_v = 1.0 + 0.1 * jax.random.uniform(keys[5], (nf,), jnp.float32)
    bn_scale = bn_g * jax.lax.rsqrt(bn_v + EPS_BN)
    bn_shift = bn_b - bn_m * bn_scale
    aff = jnp.stack([jnp.reshape(fb, (nf,)), bn_scale, bn_shift], axis=0)

    dist_w = jax.random.normal(keys[6], (), jnp.float32)
    dist_b = 0.1 * jax.random.normal(keys[7], (), jnp.float32)

    ms_w = jax.random.normal(keys[8], (3, nf + 2),
                             jnp.float32) / math.sqrt(nf + 2)
    ms_b = 0.1 * jax.random.normal(keys[9], (3,), jnp.float32)

    tail = jnp.stack([ms_w[:, nf], ms_w[:, nf + 1], ms_b,
                      jnp.stack([dist_w, dist_b, jnp.zeros(())])], axis=0)

    return dict(fw=fw, aff=aff, wy=jnp.transpose(ms_w[:, :nf]), tail=tail)


if __name__ == "__main__":
    key = jax.random.PRNGKey(0)
    k_a, k_b, k_p, k_ap, k_bp, k_par = jax.random.split(key, 6)

    B, S, L, H = 2, 8, N_LAYER, HIDDEN
    a = jax.random.normal(k_a, (B, S, L, H), jnp.float32)
    b = jax.random.normal(k_b, (B, S, L, H), jnp.float32)

    # emulate pad_sequence padding: zero out trailing sequence positions
    seq_ids = jnp.arange(S)
    a_len = jnp.array([5, 8])
    b_len = jnp.array([3, 8])
    a = a * (seq_ids[None, :, None, None] < a_len[:, None, None, None])
    b = b * (seq_ids[None, :, None, None] < b_len[:, None, None, None])

    p = jax.random.normal(k_p, (B, L, H), jnp.float32)
    ap = jax.random.normal(k_ap, (B,), jnp.float32)
    bp = jax.random.normal(k_bp, (B,), jnp.float32)

    params = init_params(k_par)

    out = msnet_forward(a, b, p, ap, bp, params)
    jax.block_until_ready(out)
    assert out.shape == (B, 3) and out.dtype == jnp.float32
    assert bool(jnp.all(jnp.isfinite(out)))
    print("KERNEL_OK")
</pallas_src>

<mosaic_0001>
module attributes {stable_mosaic.version = 11 : i64} {
  func.func @msnet_kernel(%arg0: i32, %arg1: memref<128x128xbf16, #tpu.memory_space<vmem>>, %arg2: memref<128x128xbf16, #tpu.memory_space<vmem>>, %arg3: memref<16x128xbf16, #tpu.memory_space<vmem>>, %arg4: memref<16x2xf32, #tpu.memory_space<vmem>>, %arg5: memref<128x128xbf16, #tpu.memory_space<vmem>>, %arg6: memref<640x64xbf16, #tpu.memory_space<vmem>>, %arg7: memref<3x64xf32, #tpu.memory_space<vmem>>, %arg8: memref<64x3xf32, #tpu.memory_space<vmem>>, %arg9: memref<4x3xf32, #tpu.memory_space<vmem>>, %arg10: memref<16x3xf32, #tpu.memory_space<vmem>>) attributes {dimension_semantics = [#tpu.dimension_semantics<parallel>], iteration_bounds = array<i64: 1>, scalar_prefetch = 0 : i64, scratch_operands = 0 : i64, tpu.core_type = #tpu.core_type<tc>, window_params = [{transform_indices = @transform_0, window_bounds = array<i64: 128, 128>}, {transform_indices = @transform_1, window_bounds = array<i64: 128, 128>}, {transform_indices = @transform_2, window_bounds = array<i64: 16, 128>}, {transform_indices = @transform_3, window_bounds = array<i64: 16, 2>}, {pipeline_mode = #tpu.pipeline_mode<synchronous>, transform_indices = @transform_4, window_bounds = array<i64: 128, 128>}, {pipeline_mode = #tpu.pipeline_mode<synchronous>, transform_indices = @transform_5, window_bounds = array<i64: 640, 64>}, {pipeline_mode = #tpu.pipeline_mode<synchronous>, transform_indices = @transform_6, window_bounds = array<i64: 3, 64>}, {pipeline_mode = #tpu.pipeline_mode<synchronous>, transform_indices = @transform_7, window_bounds = array<i64: 64, 3>}, {pipeline_mode = #tpu.pipeline_mode<synchronous>, transform_indices = @transform_8, window_bounds = array<i64: 4, 3>}, {transform_indices = @transform_9, window_bounds = array<i64: 16, 3>}]} {
    %c0 = arith.constant 0 : index
    %c0_0 = arith.constant 0 : index
    %0 = vector.load %arg5[%c0, %c0_0] : memref<128x128xbf16, #tpu.memory_space<vmem>>, vector<128x128xbf16>
    %c0_1 = arith.constant 0 : index
    %c0_2 = arith.constant 0 : index
    %1 = vector.load %arg1[%c0_1, %c0_2] : memref<128x128xbf16, #tpu.memory_space<vmem>>, vector<128x128xbf16>
    %c0_3 = arith.constant 0 : index
    %c0_4 = arith.constant 0 : index
    %2 = vector.load %arg2[%c0_3, %c0_4] : memref<128x128xbf16, #tpu.memory_space<vmem>>, vector<128x128xbf16>
    %3 = tpu.concatenate %1, %2 in 0 : vector<128x128xbf16>, vector<128x128xbf16> -> vector<256x128xbf16>
    %4 = arith.extf %3 : vector<256x128xbf16> to vector<256x128xf32>
    %5 = vector.shape_cast %4 : vector<256x128xf32> to vector<32x8x128xf32>
    %cst = arith.constant 0.000000e+00 : f32
    %6 = vector.broadcast %cst : f32 to vector<32x8x128xf32>
    %7 = arith.cmpf one, %5, %6 : vector<32x8x128xf32>
    %8 = arith.extui %7 : vector<32x8x128xi1> to vector<32x8x128xi32>
    %9 = arith.sitofp %8 : vector<32x8x128xi32> to vector<32x8x128xf32>
    %cst_5 = arith.constant dense<0.000000e+00> : vector<32x8xf32>
    %10 = vector.multi_reduction <add>, %9, %cst_5 [2] : vector<32x8x128xf32> to vector<32x8xf32>
    %cst_6 = arith.constant 0.000000e+00 : f32
    %11 = vector.broadcast %cst_6 : f32 to vector<32x8xf32>
    %12 = arith.cmpf oeq, %10, %11 : vector<32x8xf32>
    %13 = arith.extui %12 : vector<32x8xi1> to vector<32x8xi32>
    %14 = arith.sitofp %13 : vector<32x8xi32> to vector<32x8xf32>
    %15 = tpu.iota {dimensions = array<i32: 0>} : vector<8x8xi32>
    %16 = tpu.iota {dimensions = array<i32: 1>} : vector<8x8xi32>
    %17 = arith.cmpi sle, %15, %16 : vector<8x8xi32>
    %18 = arith.extui %17 : vector<8x8xi1> to vector<8x8xi32>
    %19 = arith.sitofp %18 : vector<8x8xi32> to vector<8x8xf32>
    %cst_7 = arith.constant dense<0.000000e+00> : vector<32x8xf32>
    %20 = tpu.matmul %14, %19, %cst_7 {dimension_numbers = #tpu.dot_dimension_numbers<[1], [0], [0], [1], [0, 0, 1, 1], [], []>} : vector<32x8xf32>, vector<8x8xf32>, vector<32x8xf32> -> vector<32x8xf32>
    %cst_8 = arith.constant 0.000000e+00 : f32
    %21 = vector.broadcast %cst_8 : f32 to vector<32x8xf32>
    %22 = arith.cmpf oeq, %20, %21 : vector<32x8xf32>
    %23 = arith.extui %22 : vector<32x8xi1> to vector<32x8xi32>
    %24 = arith.sitofp %23 : vector<32x8xi32> to vector<32x8xf32>
    %cst_9 = arith.constant dense<0.000000e+00> : vector<256x128xf32>
    %25 = tpu.matmul %3, %0, %cst_9 {dimension_numbers = #tpu.dot_dimension_numbers<[1], [0], [0], [1], [0, 0, 1, 1], [], []>} : vector<256x128xbf16>, vector<128x128xbf16>, vector<256x128xf32> -> vector<256x128xf32>
    %26 = arith.subf %4, %25 : vector<256x128xf32>
    %27 = arith.mulf %26, %26 : vector<256x128xf32>
    %28 = arith.truncf %27 : vector<256x128xf32> to vector<256x128xbf16>
    %cst_10 = arith.constant dense<0.000000e+00> : vector<256x128xf32>
    %29 = tpu.matmul %28, %0, %cst_10 {dimension_numbers = #tpu.dot_dimension_numbers<[1], [0], [0], [1], [0, 0, 1, 1], [], []>} : vector<256x128xbf16>, vector<128x128xbf16>, vector<256x128xf32> -> vector<256x128xf32>
    %cst_11 = arith.constant 9.99999974E-6 : f32
    %30 = vector.broadcast %cst_11 : f32 to vector<256x128xf32>
    %31 = arith.addf %29, %30 : vector<256x128xf32>
    %32 = math.rsqrt %31 : vector<256x128xf32>
    %33 = arith.mulf %26, %32 : vector<256x128xf32>
    %34 = vector.shape_cast %33 : vector<256x128xf32> to vector<32x8x128xf32>
    %c0_12 = arith.constant 0 : index
    %c0_13 = arith.constant 0 : index
    %35 = vector.load %arg3[%c0_12, %c0_13] : memref<16x128xbf16, #tpu.memory_space<vmem>>, vector<16x128xbf16>
    %36 = arith.extf %35 : vector<16x128xbf16> to vector<16x128xf32>
    %37 = tpu.concatenate %36, %36 in 0 : vector<16x128xf32>, vector<16x128xf32> -> vector<32x128xf32>
    %38 = vector.shape_cast %37 : vector<32x128xf32> to vector<32x1x128xf32>
    %39 = vector.broadcast %38 : vector<32x1x128xf32> to vector<32x8x128xf32>
    %40 = arith.mulf %34, %39 : vector<32x8x128xf32>
    %41 = vector.shape_cast %40 : vector<32x8x128xf32> to vector<256x128xf32>
    %42 = arith.truncf %41 : vector<256x128xf32> to vector<256x128xbf16>
    %cst_14 = arith.constant dense<0.000000e+00> : vector<256x128xf32>
    %43 = tpu.matmul %42, %0, %cst_14 {dimension_numbers = #tpu.dot_dimension_numbers<[1], [0], [0], [1], [0, 0, 1, 1], [], []>} : vector<256x128xbf16>, vector<128x128xbf16>, vector<256x128xf32> -> vector<256x128xf32>
    %cst_15 = arith.constant 5.65685415 : f32
    %44 = vector.broadcast %cst_15 : f32 to vector<256x128xf32>
    %45 = arith.mulf %43, %44 : vector<256x128xf32>
    %46 = vector.shape_cast %45 : vector<256x128xf32> to vector<32x8x128xf32>
    %cst_16 = arith.constant dense<0xFF800000> : vector<32x128xf32>
    %47 = vector.multi_reduction <maximumf>, %46, %cst_16 [1] : vector<32x8x128xf32> to vector<32x128xf32>
    %48 = vector.shape_cast %47 : vector<32x128xf32> to vector<32x1x128xf32>
    %49 = vector.broadcast %48 : vector<32x1x128xf32> to vector<32x8x128xf32>
    %50 = arith.subf %46, %49 : vector<32x8x128xf32>
    %51 = math.exp %50 : vector<32x8x128xf32>
    %52 = vector.shape_cast %24 : vector<32x8xf32> to vector<32x8x1xf32>
    %53 = vector.broadcast %52 : vector<32x8x1xf32> to vector<32x8x128xf32>
    %54 = arith.mulf %51, %53 : vector<32x8x128xf32>
    %cst_17 = arith.constant dense<0.000000e+00> : vector<32x128xf32>
    %55 = vector.multi_reduction <add>, %54, %cst_17 [1] : vector<32x8x128xf32> to vector<32x128xf32>
    %56 = vector.shape_cast %55 : vector<32x128xf32> to vector<32x1x128xf32>
    %cst_18 = arith.constant 1.000000e-15 : f32
    %57 = vector.broadcast %cst_18 : f32 to vector<32x1x128xf32>
    %58 = arith.addf %56, %57 : vector<32x1x128xf32>
    %59 = tpu.reciprocal %58 {approx = true} : vector<32x1x128xf32> -> vector<32x1x128xf32>
    %60 = vector.broadcast %59 : vector<32x1x128xf32> to vector<32x8x128xf32>
    %61 = arith.mulf %54, %60 : vector<32x8x128xf32>
    %62 = arith.mulf %34, %61 : vector<32x8x128xf32>
    %cst_19 = arith.constant dense<0.000000e+00> : vector<32x128xf32>
    %63 = vector.multi_reduction <add>, %62, %cst_19 [1] : vector<32x8x128xf32> to vector<32x128xf32>
    %64 = vector.extract_strided_slice %63 {offsets = [0, 0], sizes = [16, 128], strides = [1, 1]} : vector<32x128xf32> to vector<16x128xf32>
    %65 = vector.extract_strided_slice %63 {offsets = [16, 0], sizes = [16, 128], strides = [1, 1]} : vector<32x128xf32> to vector<16x128xf32>
    %c0_20 = arith.constant 0 : index
    %c0_21 = arith.constant 0 : index
    %66 = vector.load %arg7[%c0_20, %c0_21] : memref<3x64xf32, #tpu.memory_space<vmem>>, vector<3x64xf32>
    %67 = arith.mulf %36, %64 : vector<16x128xf32>
    %68 = arith.mulf %36, %65 : vector<16x128xf32>
    %69 = tpu.concatenate %36, %64, %65, %67, %68 in 1 : vector<16x128xf32>, vector<16x128xf32>, vector<16x128xf32>, vector<16x128xf32>, vector<16x128xf32> -> vector<16x640xf32>
    %70 = arith.truncf %69 : vector<16x640xf32> to vector<16x640xbf16>
    %c0_22 = arith.constant 0 : index
    %c0_23 = arith.constant 0 : index
    %71 = vector.load %arg6[%c0_22, %c0_23] : memref<640x64xbf16, #tpu.memory_space<vmem>>, vector<640x64xbf16>
    %cst_24 = arith.constant dense<0.000000e+00> : vector<16x64xf32>
    %72 = tpu.matmul %70, %71, %cst_24 {dimension_numbers = #tpu.dot_dimension_numbers<[1], [0], [0], [1], [0, 0, 1, 1], [], []>} : vector<16x640xbf16>, vector<640x64xbf16>, vector<16x64xf32> -> vector<16x64xf32>
    %73 = vector.extract_strided_slice %66 {offsets = [0, 0], sizes = [1, 64], strides = [1, 1]} : vector<3x64xf32> to vector<1x64xf32>
    %74 = vector.broadcast %73 : vector<1x64xf32> to vector<16x64xf32>
    %75 = arith.addf %72, %74 : vector<16x64xf32>
    %76 = vector.extract_strided_slice %66 {offsets = [1, 0], sizes = [1, 64], strides = [1, 1]} : vector<3x64xf32> to vector<1x64xf32>
    %77 = vector.broadcast %76 : vector<1x64xf32> to vector<16x64xf32>
    %78 = arith.mulf %75, %77 : vector<16x64xf32>
    %79 = vector.extract_strided_slice %66 {offsets = [2, 0], sizes = [1, 64], strides = [1, 1]} : vector<3x64xf32> to vector<1x64xf32>
    %80 = vector.broadcast %79 : vector<1x64xf32> to vector<16x64xf32>
    %81 = arith.addf %78, %80 : vector<16x64xf32>
    %cst_25 = arith.constant 0.000000e+00 : f32
    %82 = vector.broadcast %cst_25 : f32 to vector<16x64xf32>
    %83 = arith.maximumf %81, %82 : vector<16x64xf32>
    %c0_26 = arith.constant 0 : index
    %c0_27 = arith.constant 0 : index
    %84 = vector.load %arg9[%c0_26, %c0_27] : memref<4x3xf32, #tpu.memory_space<vmem>>, vector<4x3xf32>
    %c0_28 = arith.constant 0 : index
    %c0_29 = arith.constant 0 : index
    %85 = vector.load %arg4[%c0_28, %c0_29] : memref<16x2xf32, #tpu.memory_space<vmem>>, vector<16x2xf32>
    %86 = vector.extract_strided_slice %84 {offsets = [3, 0], sizes = [1, 1], strides = [1, 1]} : vector<4x3xf32> to vector<1x1xf32>
    %87 = vector.broadcast %86 : vector<1x1xf32> to vector<16x2xf32>
    %88 = arith.mulf %85, %87 : vector<16x2xf32>
    %89 = vector.extract_strided_slice %84 {offsets = [3, 1], sizes = [1, 1], strides = [1, 1]} : vector<4x3xf32> to vector<1x1xf32>
    %90 = vector.broadcast %89 : vector<1x1xf32> to vector<16x2xf32>
    %91 = arith.addf %88, %90 : vector<16x2xf32>
    %92 = math.tanh %91 : vector<16x2xf32>
    %c0_30 = arith.constant 0 : index
    %c0_31 = arith.constant 0 : index
    %93 = vector.load %arg8[%c0_30, %c0_31] : memref<64x3xf32, #tpu.memory_space<vmem>>, vector<64x3xf32>
    %cst_32 = arith.constant dense<0.000000e+00> : vector<16x3xf32>
    %94 = tpu.matmul %83, %93, %cst_32 {dimension_numbers = #tpu.dot_dimension_numbers<[1], [0], [0], [1], [0, 0, 1, 1], [], []>} : vector<16x64xf32>, vector<64x3xf32>, vector<16x3xf32> -> vector<16x3xf32>
    %95 = vector.extract_strided_slice %92 {offsets = [0, 0], sizes = [16, 1], strides = [1, 1]} : vector<16x2xf32> to vector<16x1xf32>
    %96 = vector.extract_strided_slice %84 {offsets = [0, 0], sizes = [1, 3], strides = [1, 1]} : vector<4x3xf32> to vector<1x3xf32>
    %97 = vector.broadcast %95 : vector<16x1xf32> to vector<16x3xf32>
    %98 = vector.broadcast %96 : vector<1x3xf32> to vector<16x3xf32>
    %99 = arith.mulf %97, %98 : vector<16x3xf32>
    %100 = arith.addf %94, %99 : vector<16x3xf32>
    %101 = vector.extract_strided_slice %92 {offsets = [0, 1], sizes = [16, 1], strides = [1, 1]} : vector<16x2xf32> to vector<16x1xf32>
    %102 = vector.extract_strided_slice %84 {offsets = [1, 0], sizes = [1, 3], strides = [1, 1]} : vector<4x3xf32> to vector<1x3xf32>
    %103 = vector.broadcast %101 : vector<16x1xf32> to vector<16x3xf32>
    %104 = vector.broadcast %102 : vector<1x3xf32> to vector<16x3xf32>
    %105 = arith.mulf %103, %104 : vector<16x3xf32>
    %106 = arith.addf %100, %105 : vector<16x3xf32>
    %107 = vector.extract_strided_slice %84 {offsets = [2, 0], sizes = [1, 3], strides = [1, 1]} : vector<4x3xf32> to vector<1x3xf32>
    %108 = vector.broadcast %107 : vector<1x3xf32> to vector<16x3xf32>
    %109 = arith.addf %106, %108 : vector<16x3xf32>
    %c0_33 = arith.constant 0 : index
    %c0_34 = arith.constant 0 : index
    %110 = vector.load %arg10[%c0_33, %c0_34] : memref<16x3xf32, #tpu.memory_space<vmem>>, vector<16x3xf32>
    tpu.vector_store %arg10[%c0_33, %c0_34], %109 {strides = array<i32>} : memref<16x3xf32, #tpu.memory_space<vmem>>, vector<16x3xf32>,
    return
  }
  func.func @transform_0(%arg0: i32) -> (i32, i32) {
    %c0_i32 = arith.constant 0 : i32
    %c0_i32_0 = arith.constant 0 : i32
    return %arg0, %c0_i32 : i32, i32
  }
  func.func @transform_1(%arg0: i32) -> (i32, i32) {
    %c0_i32 = arith.constant 0 : i32
    %c0_i32_0 = arith.constant 0 : i32
    return %arg0, %c0_i32 : i32, i32
  }
  func.func @transform_2(%arg0: i32) -> (i32, i32) {
    %c0_i32 = arith.constant 0 : i32
    %c0_i32_0 = arith.constant 0 : i32
    return %arg0, %c0_i32 : i32, i32
  }
  func.func @transform_3(%arg0: i32) -> (i32, i32) {
    %c0_i32 = arith.constant 0 : i32
    %c0_i32_0 = arith.constant 0 : i32
    return %arg0, %c0_i32 : i32, i32
  }
  func.func @transform_4(%arg0: i32) -> (i32, i32) {
    %c0_i32 = arith.constant 0 : i32
    %c0_i32_0 = arith.constant 0 : i32
    %c0_i32_1 = arith.constant 0 : i32
    return %c0_i32, %c0_i32_0 : i32, i32
  }
  func.func @transform_5(%arg0: i32) -> (i32, i32) {
    %c0_i32 = arith.constant 0 : i32
    %c0_i32_0 = arith.constant 0 : i32
    %c0_i32_1 = arith.constant 0 : i32
    return %c0_i32, %c0_i32_0 : i32, i32
  }
  func.func @transform_6(%arg0: i32) -> (i32, i32) {
    %c0_i32 = arith.constant 0 : i32
    %c0_i32_0 = arith.constant 0 : i32
    %c0_i32_1 = arith.constant 0 : i32
    return %c0_i32, %c0_i32_0 : i32, i32
  }
  func.func @transform_7(%arg0: i32) -> (i32, i32) {
    %c0_i32 = arith.constant 0 : i32
    %c0_i32_0 = arith.constant 0 : i32
    %c0_i32_1 = arith.constant 0 : i32
    return %c0_i32, %c0_i32_0 : i32, i32
  }
  func.func @transform_8(%arg0: i32) -> (i32, i32) {
    %c0_i32 = arith.constant 0 : i32
    %c0_i32_0 = arith.constant 0 : i32
    %c0_i32_1 = arith.constant 0 : i32
    return %c0_i32, %c0_i32_0 : i32, i32
  }
  func.func @transform_9(%arg0: i32) -> (i32, i32) {
    %c0_i32 = arith.constant 0 : i32
    %c0_i32_0 = arith.constant 0 : i32
    return %arg0, %c0_i32 : i32, i32
  }
}

</mosaic_0001>

<llo_original>
// kernel: tpu_custom_call.1
$region0: #{tpu_custom_call.1}
  #allocation0 [shape = 'u32[]', space=smem, size = 0x4, offset = 0x4, fixed_abs, tag = 'smem constant byte address 0x4 - core index']
  #allocation1 [shape = 'u32[72,128]{1,0:T(1,128)}', space=vmem, size = 0x9000, scoped, tag = 'internal scratch']
  %s0 = inlined_call_operand.vmem [shape: bf16[128,128], index: 0, kind: input, shape index: {}]
  %s1 = inlined_call_operand.vmem [shape: bf16[128,128], index: 1, kind: input, shape index: {}]
  %s2 = inlined_call_operand.vmem [shape: bf16[16,128], index: 2, kind: input, shape index: {}]
  %s3 = inlined_call_operand.vmem [shape: f32[16,2], index: 3, kind: input, shape index: {}]
  %s4 = inlined_call_operand.vmem [shape: bf16[128,128], index: 4, kind: input, shape index: {}]
  %s5 = inlined_call_operand.vmem [shape: bf16[640,64], index: 5, kind: input, shape index: {}]
  %s6 = inlined_call_operand.vmem [shape: f32[3,64], index: 6, kind: input, shape index: {}]
  %s7 = inlined_call_operand.vmem [shape: f32[64,3], index: 7, kind: input, shape index: {}]
  %s8 = inlined_call_operand.vmem [shape: f32[4,3], index: 8, kind: input, shape index: {}]
  %s9 = inlined_call_operand.vmem [shape: f32[16,3], index: 9, kind: output, shape index: {}]
  %s10 = sld [smem:[#allocation0]]
  $region46: #{tpu_custom_call.1} parent=0
    _
  %s12 = ssub.s32 1, %s10
  %s13 = scalar_select 0, %s12, %s10
  // Predicated region
  $region2: #{tpu_custom_call.1} parent=0 // pred_check
    _
  $region3: #{tpu_custom_call.1} parent=0 // pred_check_branch
    %15 = sbr.rel (0) target = $region5
  $region4: #{tpu_custom_call.1} parent=0 // pred_region
    _
  $region5: #{tpu_custom_call.1} parent=0 // pred_fallthru
    _
  // Predicated region
  $region6: #{tpu_custom_call.1} parent=0 // pred_check
    _
  $region7: #{tpu_custom_call.1} parent=0 // pred_check_branch
    %17 = sbr.rel (0) target = $region9
  $region8: #{tpu_custom_call.1} parent=0 // pred_region
    _
  $region9: #{tpu_custom_call.1} parent=0 // pred_fallthru
    _
  // Predicated region
  $region10: #{tpu_custom_call.1} parent=0 // pred_check
    _
  $region11: #{tpu_custom_call.1} parent=0 // pred_check_branch
    %19 = sbr.rel (0) target = $region13
  $region12: #{tpu_custom_call.1} parent=0 // pred_region
    _
  $region13: #{tpu_custom_call.1} parent=0 // pred_fallthru
    _
  // Predicated region
  $region14: #{tpu_custom_call.1} parent=0 // pred_check
    _
  $region15: #{tpu_custom_call.1} parent=0 // pred_check_branch
    %21 = sbr.rel (0) target = $region17
  $region16: #{tpu_custom_call.1} parent=0 // pred_region
    _
  $region17: #{tpu_custom_call.1} parent=0 // pred_fallthru
    _
  // Predicated region
  $region18: #{tpu_custom_call.1} parent=0 // pred_check
    _
  $region19: #{tpu_custom_call.1} parent=0 // pred_check_branch
    %23 = sbr.rel (0) target = $region21
  $region20: #{tpu_custom_call.1} parent=0 // pred_region
    _
  $region21: #{tpu_custom_call.1} parent=0 // pred_fallthru
    _
  // Predicated region
  $region22: #{tpu_custom_call.1} parent=0 // pred_check
    _
  $region23: #{tpu_custom_call.1} parent=0 // pred_check_branch
    %25 = sbr.rel (0) target = $region25
  $region24: #{tpu_custom_call.1} parent=0 // pred_region
    _
  $region25: #{tpu_custom_call.1} parent=0 // pred_fallthru
    _
  // Predicated region
  $region26: #{tpu_custom_call.1} parent=0 // pred_check
    _
  $region27: #{tpu_custom_call.1} parent=0 // pred_check_branch
    %27 = sbr.rel (0) target = $region29
  $region28: #{tpu_custom_call.1} parent=0 // pred_region
    _
  $region29: #{tpu_custom_call.1} parent=0 // pred_fallthru
    _
  // Predicated region
  $region30: #{tpu_custom_call.1} parent=0 // pred_check
    _
  $region31: #{tpu_custom_call.1} parent=0 // pred_check_branch
    %29 = sbr.rel (0) target = $region33
  $region32: #{tpu_custom_call.1} parent=0 // pred_region
    _
  $region33: #{tpu_custom_call.1} parent=0 // pred_fallthru
    _
  // Predicated region
  $region34: #{tpu_custom_call.1} parent=0 // pred_check
    _
  $region35: #{tpu_custom_call.1} parent=0 // pred_check_branch
    %31 = sbr.rel (0) target = $region37
  $region36: #{tpu_custom_call.1} parent=0 // pred_region
    _
  $region37: #{tpu_custom_call.1} parent=0 // pred_fallthru
    _
  %v32 = vld [vmem:[%s4] sm:$0xf]
  %v33 = vld [vmem:[%s4 + $0x4] sm:$0xf]
  %v34 = vld [vmem:[%s4 + $0x8] sm:$0xf]
  %v35 = vld [vmem:[%s4 + $0xc] sm:$0xf]
  %v36 = vld [vmem:[%s4 + $0x10] sm:$0xf]
  %v37 = vld [vmem:[%s4 + $0x14] sm:$0xf]
  %v38 = vld [vmem:[%s4 + $0x18] sm:$0xf]
  %v39 = vld [vmem:[%s4 + $0x1c] sm:$0xf]
  %v40 = vld [vmem:[%s4 + $0x20] sm:$0xf]
  %v41 = vld [vmem:[%s4 + $0x24] sm:$0xf]
  %v42 = vld [vmem:[%s4 + $0x28] sm:$0xf]
  %v43 = vld [vmem:[%s4 + $0x2c] sm:$0xf]
  %v44 = vld [vmem:[%s4 + $0x30] sm:$0xf]
  %v45 = vld [vmem:[%s4 + $0x34] sm:$0xf]
  %v46 = vld [vmem:[%s4 + $0x38] sm:$0xf]
  %v47 = vld [vmem:[%s4 + $0x3c] sm:$0xf]
  %v48 = vld [vmem:[%s0] sm:$0xf]
  %v49 = vld [vmem:[%s0 + $0x4] sm:$0xf]
  %v50 = vld [vmem:[%s0 + $0x8] sm:$0xf]
  %v51 = vld [vmem:[%s0 + $0xc] sm:$0xf]
  %v52 = vld [vmem:[%s0 + $0x10] sm:$0xf]
  %v53 = vld [vmem:[%s0 + $0x14] sm:$0xf]
  %v54 = vld [vmem:[%s0 + $0x18] sm:$0xf]
  %v55 = vld [vmem:[%s0 + $0x1c] sm:$0xf]
  %v56 = vld [vmem:[%s0 + $0x20] sm:$0xf]
  %v57 = vld [vmem:[%s0 + $0x24] sm:$0xf]
  %v58 = vld [vmem:[%s0 + $0x28] sm:$0xf]
  %v59 = vld [vmem:[%s0 + $0x2c] sm:$0xf]
  %v60 = vld [vmem:[%s0 + $0x30] sm:$0xf]
  %v61 = vld [vmem:[%s0 + $0x34] sm:$0xf]
  %v62 = vld [vmem:[%s0 + $0x38] sm:$0xf]
  %v63 = vld [vmem:[%s0 + $0x3c] sm:$0xf]
  %v64 = vld [vmem:[%s1] sm:$0xf]
  %v65 = vld [vmem:[%s1 + $0x4] sm:$0xf]
  %v66 = vld [vmem:[%s1 + $0x8] sm:$0xf]
  %v67 = vld [vmem:[%s1 + $0xc] sm:$0xf]
  %v68 = vld [vmem:[%s1 + $0x10] sm:$0xf]
  %v69 = vld [vmem:[%s1 + $0x14] sm:$0xf]
  %v70 = vld [vmem:[%s1 + $0x18] sm:$0xf]
  %v71 = vld [vmem:[%s1 + $0x1c] sm:$0xf]
  %v72 = vld [vmem:[%s1 + $0x20] sm:$0xf]
  %v73 = vld [vmem:[%s1 + $0x24] sm:$0xf]
  %v74 = vld [vmem:[%s1 + $0x28] sm:$0xf]
  %v75 = vld [vmem:[%s1 + $0x2c] sm:$0xf]
  %v76 = vld [vmem:[%s1 + $0x30] sm:$0xf]
  %v77 = vld [vmem:[%s1 + $0x34] sm:$0xf]
  %v78 = vld [vmem:[%s1 + $0x38] sm:$0xf]
  %v79 = vld [vmem:[%s1 + $0x3c] sm:$0xf]
  %v96 = vunpack.c.l.b16 %v48
  %v97 = vunpack.c.l.b16 %v49
  %v98 = vunpack.c.l.b16 %v50
  %v99 = vunpack.c.l.b16 %v51
  %v100 = vunpack.c.l.b16 %v52
  %v101 = vunpack.c.l.b16 %v53
  %v102 = vunpack.c.l.b16 %v54
  %v103 = vunpack.c.l.b16 %v55
  %v104 = vunpack.c.l.b16 %v56
  %v105 = vunpack.c.l.b16 %v57
  %v106 = vunpack.c.l.b16 %v58
  %v107 = vunpack.c.l.b16 %v59
  %v108 = vunpack.c.l.b16 %v60
  %v109 = vunpack.c.l.b16 %v61
  %v110 = vunpack.c.l.b16 %v62
  %v111 = vunpack.c.l.b16 %v63
  %v112 = vpack.c.b16 %v97, %v96
  %v113 = vpack.c.b16 %v99, %v98
  %v114 = vpack.c.b16 %v101, %v100
  %v115 = vpack.c.b16 %v103, %v102
  %v116 = vpack.c.b16 %v105, %v104
  %v117 = vpack.c.b16 %v107, %v106
  %v118 = vpack.c.b16 %v109, %v108
  %v119 = vpack.c.b16 %v111, %v110
  %v144 = vunpack.c.l.b16 %v64
  %v145 = vunpack.c.l.b16 %v65
  %v146 = vunpack.c.l.b16 %v66
  %v147 = vunpack.c.l.b16 %v67
  %v148 = vunpack.c.l.b16 %v68
  %v149 = vunpack.c.l.b16 %v69
  %v150 = vunpack.c.l.b16 %v70
  %v151 = vunpack.c.l.b16 %v71
  %v152 = vunpack.c.l.b16 %v72
  %v153 = vunpack.c.l.b16 %v73
  %v154 = vunpack.c.l.b16 %v74
  %v155 = vunpack.c.l.b16 %v75
  %v156 = vunpack.c.l.b16 %v76
  %v157 = vunpack.c.l.b16 %v77
  %v158 = vunpack.c.l.b16 %v78
  %v159 = vunpack.c.l.b16 %v79
  %v160 = vpack.c.b16 %v145, %v144
  %v161 = vpack.c.b16 %v147, %v146
  %v162 = vpack.c.b16 %v149, %v148
  %v163 = vpack.c.b16 %v151, %v150
  %v164 = vpack.c.b16 %v153, %v152
  %v165 = vpack.c.b16 %v155, %v154
  %v166 = vpack.c.b16 %v157, %v156
  %v167 = vpack.c.b16 %v159, %v158
  %v176 = vunpack.c.l.bf16 %v112
  %v177 = vunpack.c.h.bf16 %v112
  %v178 = vunpack.c.l.bf16 %v113
  %v179 = vunpack.c.h.bf16 %v113
  %v180 = vunpack.c.l.bf16 %v114
  %v181 = vunpack.c.h.bf16 %v114
  %v182 = vunpack.c.l.bf16 %v115
  %v183 = vunpack.c.h.bf16 %v115
  %v184 = vunpack.c.l.bf16 %v116
  %v185 = vunpack.c.h.bf16 %v116
  %v186 = vunpack.c.l.bf16 %v117
  %v187 = vunpack.c.h.bf16 %v117
  %v188 = vunpack.c.l.bf16 %v118
  %v189 = vunpack.c.h.bf16 %v118
  %v190 = vunpack.c.l.bf16 %v119
  %v191 = vunpack.c.h.bf16 %v119
  %v192 = vunpack.c.l.bf16 %v160
  %v193 = vunpack.c.h.bf16 %v160
  %v194 = vunpack.c.l.bf16 %v161
  %v195 = vunpack.c.h.bf16 %v161
  %v196 = vunpack.c.l.bf16 %v162
  %v197 = vunpack.c.h.bf16 %v162
  %v198 = vunpack.c.l.bf16 %v163
  %v199 = vunpack.c.h.bf16 %v163
  %v200 = vunpack.c.l.bf16 %v164
  %v201 = vunpack.c.h.bf16 %v164
  %v202 = vunpack.c.l.bf16 %v165
  %v203 = vunpack.c.h.bf16 %v165
  %v204 = vunpack.c.l.bf16 %v166
  %v205 = vunpack.c.h.bf16 %v166
  %v206 = vunpack.c.l.bf16 %v167
  %v207 = vunpack.c.h.bf16 %v167
  %vm208 = vcmp.ne.f32.partialorder %v176, 0.0
  %vm209 = vcmp.ne.f32.partialorder %v177, 0.0
  %vm210 = vcmp.ne.f32.partialorder %v178, 0.0
  %vm211 = vcmp.ne.f32.partialorder %v179, 0.0
  %vm212 = vcmp.ne.f32.partialorder %v180, 0.0
  %vm213 = vcmp.ne.f32.partialorder %v181, 0.0
  %vm214 = vcmp.ne.f32.partialorder %v182, 0.0
  %vm215 = vcmp.ne.f32.partialorder %v183, 0.0
  %vm216 = vcmp.ne.f32.partialorder %v184, 0.0
  %vm217 = vcmp.ne.f32.partialorder %v185, 0.0
  %vm218 = vcmp.ne.f32.partialorder %v186, 0.0
  %vm219 = vcmp.ne.f32.partialorder %v187, 0.0
  %vm220 = vcmp.ne.f32.partialorder %v188, 0.0
  %vm221 = vcmp.ne.f32.partialorder %v189, 0.0
  %vm222 = vcmp.ne.f32.partialorder %v190, 0.0
  %vm223 = vcmp.ne.f32.partialorder %v191, 0.0
  %vm224 = vcmp.ne.f32.partialorder %v192, 0.0
  %vm225 = vcmp.ne.f32.partialorder %v193, 0.0
  %vm226 = vcmp.ne.f32.partialorder %v194, 0.0
  %vm227 = vcmp.ne.f32.partialorder %v195, 0.0
  %vm228 = vcmp.ne.f32.partialorder %v196, 0.0
  %vm229 = vcmp.ne.f32.partialorder %v197, 0.0
  %vm230 = vcmp.ne.f32.partialorder %v198, 0.0
  %vm231 = vcmp.ne.f32.partialorder %v199, 0.0
  %vm232 = vcmp.ne.f32.partialorder %v200, 0.0
  %vm233 = vcmp.ne.f32.partialorder %v201, 0.0
  %vm234 = vcmp.ne.f32.partialorder %v202, 0.0
  %vm235 = vcmp.ne.f32.partialorder %v203, 0.0
  %vm236 = vcmp.ne.f32.partialorder %v204, 0.0
  %vm237 = vcmp.ne.f32.partialorder %v205, 0.0
  %vm238 = vcmp.ne.f32.partialorder %v206, 0.0
  %vm239 = vcmp.ne.f32.partialorder %v207, 0.0
  %v240 = vsel %vm208, 1, 0
  %v241 = vsel %vm209, 1, 0
  %v242 = vsel %vm210, 1, 0
  %v243 = vsel %vm211, 1, 0
  %v244 = vsel %vm212, 1, 0
  %v245 = vsel %vm213, 1, 0
  %v246 = vsel %vm214, 1, 0
  %v247 = vsel %vm215, 1, 0
  %v248 = vsel %vm216, 1, 0
  %v249 = vsel %vm217, 1, 0
  %v250 = vsel %vm218, 1, 0
  %v251 = vsel %vm219, 1, 0
  %v252 = vsel %vm220, 1, 0
  %v253 = vsel %vm221, 1, 0
  %v254 = vsel %vm222, 1, 0
  %v255 = vsel %vm223, 1, 0
  %v256 = vsel %vm224, 1, 0
  %v257 = vsel %vm225, 1, 0
  %v258 = vsel %vm226, 1, 0
  %v259 = vsel %vm227, 1, 0
  %v260 = vsel %vm228, 1, 0
  %v261 = vsel %vm229, 1, 0
  %v262 = vsel %vm230, 1, 0
  %v263 = vsel %vm231, 1, 0
  %v264 = vsel %vm232, 1, 0
  %v265 = vsel %vm233, 1, 0
  %v266 = vsel %vm234, 1, 0
  %v267 = vsel %vm235, 1, 0
  %v268 = vsel %vm236, 1, 0
  %v269 = vsel %vm237, 1, 0
  %v270 = vsel %vm238, 1, 0
  %v271 = vsel %vm239, 1, 0
  %v272 = vcvt.s32.f32 %v240
  %v273 = vcvt.s32.f32 %v241
  %v274 = vcvt.s32.f32 %v242
  %v275 = vcvt.s32.f32 %v243
  %v276 = vcvt.s32.f32 %v244
  %v277 = vcvt.s32.f32 %v245
  %v278 = vcvt.s32.f32 %v246
  %v279 = vcvt.s32.f32 %v247
  %v280 = vcvt.s32.f32 %v248
  %v281 = vcvt.s32.f32 %v249
  %v282 = vcvt.s32.f32 %v250
  %v283 = vcvt.s32.f32 %v251
  %v284 = vcvt.s32.f32 %v252
  %v285 = vcvt.s32.f32 %v253
  %v286 = vcvt.s32.f32 %v254
  %v287 = vcvt.s32.f32 %v255
  %v288 = vcvt.s32.f32 %v256
  %v289 = vcvt.s32.f32 %v257
  %v290 = vcvt.s32.f32 %v258
  %v291 = vcvt.s32.f32 %v259
  %v292 = vcvt.s32.f32 %v260
  %v293 = vcvt.s32.f32 %v261
  %v294 = vcvt.s32.f32 %v262
  %v295 = vcvt.s32.f32 %v263
  %v296 = vcvt.s32.f32 %v264
  %v297 = vcvt.s32.f32 %v265
  %v298 = vcvt.s32.f32 %v266
  %v299 = vcvt.s32.f32 %v267
  %v300 = vcvt.s32.f32 %v268
  %v301 = vcvt.s32.f32 %v269
  %v302 = vcvt.s32.f32 %v270
  %v303 = vcvt.s32.f32 %v271
  %304 = vadd.xlane.f32.xlu0 %v272
  %v305 = vpop.xlane.xlu0 %304
  %306 = vadd.xlane.f32.xlu0 %v273
  %v307 = vpop.xlane.xlu0 %306
  %308 = vadd.xlane.f32.xlu0 %v274
  %v309 = vpop.xlane.xlu0 %308
  %310 = vadd.xlane.f32.xlu0 %v275
  %v311 = vpop.xlane.xlu0 %310
  %312 = vadd.xlane.f32.xlu0 %v276
  %v313 = vpop.xlane.xlu0 %312
  %314 = vadd.xlane.f32.xlu0 %v277
  %v315 = vpop.xlane.xlu0 %314
  %316 = vadd.xlane.f32.xlu0 %v278
  %v317 = vpop.xlane.xlu0 %316
  %318 = vadd.xlane.f32.xlu0 %v279
  %v319 = vpop.xlane.xlu0 %318
  %320 = vadd.xlane.f32.xlu0 %v280
  %v321 = vpop.xlane.xlu0 %320
  %322 = vadd.xlane.f32.xlu0 %v281
  %v323 = vpop.xlane.xlu0 %322
  %324 = vadd.xlane.f32.xlu0 %v282
  %v325 = vpop.xlane.xlu0 %324
  %326 = vadd.xlane.f32.xlu0 %v283
  %v327 = vpop.xlane.xlu0 %326
  %328 = vadd.xlane.f32.xlu0 %v284
  %v329 = vpop.xlane.xlu0 %328
  %330 = vadd.xlane.f32.xlu0 %v285
  %v331 = vpop.xlane.xlu0 %330
  %332 = vadd.xlane.f32.xlu0 %v286
  %v333 = vpop.xlane.xlu0 %332
  %334 = vadd.xlane.f32.xlu0 %v287
  %v335 = vpop.xlane.xlu0 %334
  %336 = vadd.xlane.f32.xlu0 %v288
  %v337 = vpop.xlane.xlu0 %336
  %338 = vadd.xlane.f32.xlu0 %v289
  %v339 = vpop.xlane.xlu0 %338
  %340 = vadd.xlane.f32.xlu0 %v290
  %v341 = vpop.xlane.xlu0 %340
  %342 = vadd.xlane.f32.xlu0 %v291
  %v343 = vpop.xlane.xlu0 %342
  %344 = vadd.xlane.f32.xlu0 %v292
  %v345 = vpop.xlane.xlu0 %344
  %346 = vadd.xlane.f32.xlu0 %v293
  %v347 = vpop.xlane.xlu0 %346
  %348 = vadd.xlane.f32.xlu0 %v294
  %v349 = vpop.xlane.xlu0 %348
  %350 = vadd.xlane.f32.xlu0 %v295
  %v351 = vpop.xlane.xlu0 %350
  %352 = vadd.xlane.f32.xlu0 %v296
  %v353 = vpop.xlane.xlu0 %352
  %354 = vadd.xlane.f32.xlu0 %v297
  %v355 = vpop.xlane.xlu0 %354
  %356 = vadd.xlane.f32.xlu0 %v298
  %v357 = vpop.xlane.xlu0 %356
  %358 = vadd.xlane.f32.xlu0 %v299
  %v359 = vpop.xlane.xlu0 %358
  %360 = vadd.xlane.f32.xlu0 %v300
  %v361 = vpop.xlane.xlu0 %360
  %362 = vadd.xlane.f32.xlu0 %v301
  %v363 = vpop.xlane.xlu0 %362
  %364 = vadd.xlane.f32.xlu0 %v302
  %v365 = vpop.xlane.xlu0 %364
  %366 = vadd.xlane.f32.xlu0 %v303
  %v367 = vpop.xlane.xlu0 %366
  %vm368 = vcmp.eq.f32.partialorder %v305, 0.0
  %vm369 = vcmp.eq.f32.partialorder %v307, 0.0
  %vm370 = vcmp.eq.f32.partialorder %v309, 0.0
  %vm371 = vcmp.eq.f32.partialorder %v311, 0.0
  %vm372 = vcmp.eq.f32.partialorder %v313, 0.0
  %vm373 = vcmp.eq.f32.partialorder %v315, 0.0
  %vm374 = vcmp.eq.f32.partialorder %v317, 0.0
  %vm375 = vcmp.eq.f32.partialorder %v319, 0.0
  %vm376 = vcmp.eq.f32.partialorder %v321, 0.0
  %vm377 = vcmp.eq.f32.partialorder %v323, 0.0
  %vm378 = vcmp.eq.f32.partialorder %v325, 0.0
  %vm379 = vcmp.eq.f32.partialorder %v327, 0.0
  %vm380 = vcmp.eq.f32.partialorder %v329, 0.0
  %vm381 = vcmp.eq.f32.partialorder %v331, 0.0
  %vm382 = vcmp.eq.f32.partialorder %v333, 0.0
  %vm383 = vcmp.eq.f32.partialorder %v335, 0.0
  %vm384 = vcmp.eq.f32.partialorder %v337, 0.0
  %vm385 = vcmp.eq.f32.partialorder %v339, 0.0
  %vm386 = vcmp.eq.f32.partialorder %v341, 0.0
  %vm387 = vcmp.eq.f32.partialorder %v343, 0.0
  %vm388 = vcmp.eq.f32.partialorder %v345, 0.0
  %vm389 = vcmp.eq.f32.partialorder %v347, 0.0
  %vm390 = vcmp.eq.f32.partialorder %v349, 0.0
  %vm391 = vcmp.eq.f32.partialorder %v351, 0.0
  %vm392 = vcmp.eq.f32.partialorder %v353, 0.0
  %vm393 = vcmp.eq.f32.partialorder %v355, 0.0
  %vm394 = vcmp.eq.f32.partialorder %v357, 0.0
  %vm395 = vcmp.eq.f32.partialorder %v359, 0.0
  %vm396 = vcmp.eq.f32.partialorder %v361, 0.0
  %vm397 = vcmp.eq.f32.partialorder %v363, 0.0
  %vm398 = vcmp.eq.f32.partialorder %v365, 0.0
  %vm399 = vcmp.eq.f32.partialorder %v367, 0.0
  %v400 = vsel %vm368, 1, 0
  %v401 = vsel %vm369, 1, 0
  %v402 = vsel %vm370, 1, 0
  %v403 = vsel %vm371, 1, 0
  %v404 = vsel %vm372, 1, 0
  %v405 = vsel %vm373, 1, 0
  %v406 = vsel %vm374, 1, 0
  %v407 = vsel %vm375, 1, 0
  %v408 = vsel %vm376, 1, 0
  %v409 = vsel %vm377, 1, 0
  %v410 = vsel %vm378, 1, 0
  %v411 = vsel %vm379, 1, 0
  %v412 = vsel %vm380, 1, 0
  %v413 = vsel %vm381, 1, 0
  %v414 = vsel %vm382, 1, 0
  %v415 = vsel %vm383, 1, 0
  %v416 = vsel %vm384, 1, 0
  %v417 = vsel %vm385, 1, 0
  %v418 = vsel %vm386, 1, 0
  %v419 = vsel %vm387, 1, 0
  %v420 = vsel %vm388, 1, 0
  %v421 = vsel %vm389, 1, 0
  %v422 = vsel %vm390, 1, 0
  %v423 = vsel %vm391, 1, 0
  %v424 = vsel %vm392, 1, 0
  %v425 = vsel %vm393, 1, 0
  %v426 = vsel %vm394, 1, 0
  %v427 = vsel %vm395, 1, 0
  %v428 = vsel %vm396, 1, 0
  %v429 = vsel %vm397, 1, 0
  %v430 = vsel %vm398, 1, 0
  %v431 = vsel %vm399, 1, 0
  %v432 = vcvt.s32.f32 %v400
  %v433 = vcvt.s32.f32 %v401
  %v434 = vcvt.s32.f32 %v402
  %v435 = vcvt.s32.f32 %v403
  %v436 = vcvt.s32.f32 %v404
  %v437 = vcvt.s32.f32 %v405
  %v438 = vcvt.s32.f32 %v406
  %v439 = vcvt.s32.f32 %v407
  %v440 = vcvt.s32.f32 %v408
  %v441 = vcvt.s32.f32 %v409
  %v442 = vcvt.s32.f32 %v410
  %v443 = vcvt.s32.f32 %v411
  %v444 = vcvt.s32.f32 %v412
  %v445 = vcvt.s32.f32 %v413
  %v446 = vcvt.s32.f32 %v414
  %v447 = vcvt.s32.f32 %v415
  %v448 = vcvt.s32.f32 %v416
  %v449 = vcvt.s32.f32 %v417
  %v450 = vcvt.s32.f32 %v418
  %v451 = vcvt.s32.f32 %v419
  %v452 = vcvt.s32.f32 %v420
  %v453 = vcvt.s32.f32 %v421
  %v454 = vcvt.s32.f32 %v422
  %v455 = vcvt.s32.f32 %v423
  %v456 = vcvt.s32.f32 %v424
  %v457 = vcvt.s32.f32 %v425
  %v458 = vcvt.s32.f32 %v426
  %v459 = vcvt.s32.f32 %v427
  %v460 = vcvt.s32.f32 %v428
  %v461 = vcvt.s32.f32 %v429
  %v462 = vcvt.s32.f32 %v430
  %v463 = vcvt.s32.f32 %v431
  %v464 = vlaneseq
  %v465 = vshrl.u32 %v464, 7
  %v466 = vlaneseq
  %v467 = vand.u32 %v466, 127
  %vm468 = vcmp.le.s32.totalorder %v465, %v467
  %v469 = vsel %vm468, 1, 0
  %v470 = vcvt.s32.f32 %v469
  %v503 = vperm.slane %v432, %v467
  %v504 = vperm.slane %v433, %v467
  %v505 = vperm.slane %v434, %v467
  %v506 = vperm.slane %v435, %v467
  %v507 = vperm.slane %v436, %v467
  %v508 = vperm.slane %v437, %v467
  %v509 = vperm.slane %v438, %v467
  %v510 = vperm.slane %v439, %v467
  %v511 = vperm.slane %v440, %v467
  %v512 = vperm.slane %v441, %v467
  %v513 = vperm.slane %v442, %v467
  %v514 = vperm.slane %v443, %v467
  %v515 = vperm.slane %v444, %v467
  %v516 = vperm.slane %v445, %v467
  %v517 = vperm.slane %v446, %v467
  %v518 = vperm.slane %v447, %v467
  %v519 = vperm.slane %v448, %v467
  %v520 = vperm.slane %v449, %v467
  %v521 = vperm.slane %v450, %v467
  %v522 = vperm.slane %v451, %v467
  %v523 = vperm.slane %v452, %v467
  %v524 = vperm.slane %v453, %v467
  %v525 = vperm.slane %v454, %v467
  %v526 = vperm.slane %v455, %v467
  %v527 = vperm.slane %v456, %v467
  %v528 = vperm.slane %v457, %v467
  %v529 = vperm.slane %v458, %v467
  %v530 = vperm.slane %v459, %v467
  %v531 = vperm.slane %v460, %v467
  %v532 = vperm.slane %v461, %v467
  %v533 = vperm.slane %v462, %v467
  %v534 = vperm.slane %v463, %v467
  %vm535 = vcmask 1041409
  %v536 = vsel %vm535, %v504, %v503
  %vm537 = vcmask 1042434
  %v538 = vsel %vm537, %v505, %v536
  %vm539 = vcmask 1043459
  %v540 = vsel %vm539, %v506, %v538
  %vm541 = vcmask 1044484
  %v542 = vsel %vm541, %v507, %v540
  %vm543 = vcmask 1045509
  %v544 = vsel %vm543, %v508, %v542
  %vm545 = vcmask 1046534
  %v546 = vsel %vm545, %v509, %v544
  %vm547 = vcmask 1047559
  %v548 = vsel %vm547, %v510, %v546
  %v549 = vsel %vm535, %v512, %v511
  %v550 = vsel %vm537, %v513, %v549
  %v551 = vsel %vm539, %v514, %v550
  %v552 = vsel %vm541, %v515, %v551
  %v553 = vsel %vm543, %v516, %v552
  %v554 = vsel %vm545, %v517, %v553
  %v555 = vsel %vm547, %v518, %v554
  %v556 = vsel %vm535, %v520, %v519
  %v557 = vsel %vm537, %v521, %v556
  %v558 = vsel %vm539, %v522, %v557
  %v559 = vsel %vm541, %v523, %v558
  %v560 = vsel %vm543, %v524, %v559
  %v561 = vsel %vm545, %v525, %v560
  %v562 = vsel %vm547, %v526, %v561
  %v563 = vsel %vm535, %v528, %v527
  %v564 = vsel %vm537, %v529, %v563
  %v565 = vsel %vm539, %v530, %v564
  %v566 = vsel %vm541, %v531, %v565
  %v567 = vsel %vm543, %v532, %v566
  %v568 = vsel %vm545, %v533, %v567
  %v569 = vsel %vm547, %v534, %v568
  %vm570 = vcmask 64512
  %v571 = vsel %vm570, %v548, 0
  %v573 = vsel %vm570, %v555, 0
  %v575 = vsel %vm570, %v562, 0
  %v577 = vsel %vm570, %v569, 0
  %579 = vmatpush.msra.mxu0 0.0
  %580 = vmatpush.msra.mxu0 0.0
  %581 = vmatpush.msra.mxu0 0.0
  %582 = vmatpush.msra.mxu0 0.0
  %583 = vmatpush.msra.mxu0 0.0
  %584 = vmatpush.msra.mxu0 0.0
  %585 = vmatpush.msra.mxu0 0.0
  %586 = vmatpush.msra.mxu0 0.0
  %587 = vmatpush.msra.mxu0 0.0
  %588 = vmatpush.msra.mxu0 0.0
  %589 = vmatpush.msra.mxu0 0.0
  %590 = vmatpush.msra.mxu0 0.0
  %591 = vmatpush.msra.mxu0 0.0
  %592 = vmatpush.msra.mxu0 0.0
  %593 = vmatpush.msra.mxu0 0.0
  %594 = vmatpush.msra.mxu0 %v470
  %595 = vmatmul.f32.gmra.mxu0 %v571
  %v596 = vpop.f32.mrf.mxu0
  %v597 = vadd.f32 0.0, %v596
  %598 = vmatmul.f32.gmra.mxu0 %v573
  %v599 = vpop.f32.mrf.mxu0
  %v600 = vadd.f32 0.0, %v599
  %601 = vmatmul.f32.gmra.mxu0 %v575
  %v602 = vpop.f32.mrf.mxu0
  %v603 = vadd.f32 0.0, %v602
  %604 = vmatmul.f32.gmra.mxu0 %v577
  %v605 = vpop.f32.mrf.mxu0
  %v606 = vadd.f32 0.0, %v605
  %607 = vdwg.mxu0
  %vm608 = vcmp.eq.f32.partialorder %v597, 0.0
  %vm609 = vcmp.eq.f32.partialorder %v600, 0.0
  %vm610 = vcmp.eq.f32.partialorder %v603, 0.0
  %vm611 = vcmp.eq.f32.partialorder %v606, 0.0
  %v612 = vsel %vm608, 1, 0
  %v613 = vsel %vm609, 1, 0
  %v614 = vsel %vm610, 1, 0
  %v615 = vsel %vm611, 1, 0
  %v616 = vcvt.s32.f32 %v612
  %v617 = vcvt.s32.f32 %v613
  %v618 = vcvt.s32.f32 %v614
  %v619 = vcvt.s32.f32 %v615
  %v636 = vunpack.c.l.b16 %v32
  %v637 = vunpack.c.l.b16 %v33
  %v638 = vunpack.c.l.b16 %v34
  %v639 = vunpack.c.l.b16 %v35
  %v640 = vunpack.c.l.b16 %v36
  %v641 = vunpack.c.l.b16 %v37
  %v642 = vunpack.c.l.b16 %v38
  %v643 = vunpack.c.l.b16 %v39
  %v644 = vunpack.c.l.b16 %v40
  %v645 = vunpack.c.l.b16 %v41
  %v646 = vunpack.c.l.b16 %v42
  %v647 = vunpack.c.l.b16 %v43
  %v648 = vunpack.c.l.b16 %v44
  %v649 = vunpack.c.l.b16 %v45
  %v650 = vunpack.c.l.b16 %v46
  %v651 = vunpack.c.l.b16 %v47
  %v652 = vpack.c.b16 %v637, %v636
  %v653 = vpack.c.b16 %v639, %v638
  %v654 = vpack.c.b16 %v641, %v640
  %v655 = vpack.c.b16 %v643, %v642
  %v656 = vpack.c.b16 %v645, %v644
  %v657 = vpack.c.b16 %v647, %v646
  %v658 = vpack.c.b16 %v649, %v648
  %v659 = vpack.c.b16 %v651, %v650
  %668 = vmatpush.bf16.msra.mxu0 %v659
  %669 = vmatpush.bf16.msra.mxu0 %v658
  %670 = vmatpush.bf16.msra.mxu0 %v657
  %671 = vmatpush.bf16.msra.mxu0 %v656
  %672 = vmatpush.bf16.msra.mxu0 %v655
  %673 = vmatpush.bf16.msra.mxu0 %v654
  %674 = vmatpush.bf16.msra.mxu0 %v653
  %675 = vmatpush.bf16.msra.mxu0 %v652
  %676 = vmatmul.bf16.gmra.mxu0 %v112
  %v677 = vpop.f32.mrf.mxu0
  %v678 = vadd.f32 0.0, %v677
  %v679 = vpop.f32.mrf.mxu0
  %v680 = vadd.f32 0.0, %v679
  %681 = vmatmul.bf16.gmra.mxu0 %v113
  %v682 = vpop.f32.mrf.mxu0
  %v683 = vadd.f32 0.0, %v682
  %v684 = vpop.f32.mrf.mxu0
  %v685 = vadd.f32 0.0, %v684
  %686 = vmatmul.bf16.gmra.mxu0 %v114
  %v687 = vpop.f32.mrf.mxu0
  %v688 = vadd.f32 0.0, %v687
  %v689 = vpop.f32.mrf.mxu0
  %v690 = vadd.f32 0.0, %v689
  %691 = vmatmul.bf16.gmra.mxu0 %v115
  %v692 = vpop.f32.mrf.mxu0
  %v693 = vadd.f32 0.0, %v692
  %v694 = vpop.f32.mrf.mxu0
  %v695 = vadd.f32 0.0, %v694
  %696 = vmatmul.bf16.gmra.mxu0 %v116
  %v697 = vpop.f32.mrf.mxu0
  %v698 = vadd.f32 0.0, %v697
  %v699 = vpop.f32.mrf.mxu0
  %v700 = vadd.f32 0.0, %v699
  %701 = vmatmul.bf16.gmra.mxu0 %v117
  %v702 = vpop.f32.mrf.mxu0
  %v703 = vadd.f32 0.0, %v702
  %v704 = vpop.f32.mrf.mxu0
  %v705 = vadd.f32 0.0, %v704
  %706 = vmatmul.bf16.gmra.mxu0 %v118
  %v707 = vpop.f32.mrf.mxu0
  %v708 = vadd.f32 0.0, %v707
  %v709 = vpop.f32.mrf.mxu0
  %v710 = vadd.f32 0.0, %v709
  %711 = vmatmul.bf16.gmra.mxu0 %v119
  %v712 = vpop.f32.mrf.mxu0
  %v713 = vadd.f32 0.0, %v712
  %v714 = vpop.f32.mrf.mxu0
  %v715 = vadd.f32 0.0, %v714
  %716 = vmatmul.bf16.gmra.mxu0 %v160
  %v717 = vpop.f32.mrf.mxu0
  %v718 = vadd.f32 0.0, %v717
  %v719 = vpop.f32.mrf.mxu0
  %v720 = vadd.f32 0.0, %v719
  %721 = vmatmul.bf16.gmra.mxu0 %v161
  %v722 = vpop.f32.mrf.mxu0
  %v723 = vadd.f32 0.0, %v722
  %v724 = vpop.f32.mrf.mxu0
  %v725 = vadd.f32 0.0, %v724
  %726 = vmatmul.bf16.gmra.mxu0 %v162
  %v727 = vpop.f32.mrf.mxu0
  %v728 = vadd.f32 0.0, %v727
  %v729 = vpop.f32.mrf.mxu0
  %v730 = vadd.f32 0.0, %v729
  %731 = vmatmul.bf16.gmra.mxu0 %v163
  %v732 = vpop.f32.mrf.mxu0
  %v733 = vadd.f32 0.0, %v732
  %v734 = vpop.f32.mrf.mxu0
  %v735 = vadd.f32 0.0, %v734
  %736 = vmatmul.bf16.gmra.mxu0 %v164
  %v737 = vpop.f32.mrf.mxu0
  %v738 = vadd.f32 0.0, %v737
  %v739 = vpop.f32.mrf.mxu0
  %v740 = vadd.f32 0.0, %v739
  %741 = vmatmul.bf16.gmra.mxu0 %v165
  %v742 = vpop.f32.mrf.mxu0
  %v743 = vadd.f32 0.0, %v742
  %v744 = vpop.f32.mrf.mxu0
  %v745 = vadd.f32 0.0, %v744
  %746 = vmatmul.bf16.gmra.mxu0 %v166
  %v747 = vpop.f32.mrf.mxu0
  %v748 = vadd.f32 0.0, %v747
  %v749 = vpop.f32.mrf.mxu0
  %v750 = vadd.f32 0.0, %v749
  %751 = vmatmul.bf16.gmra.mxu0 %v167
  %v752 = vpop.f32.mrf.mxu0
  %v753 = vadd.f32 0.0, %v752
  %v754 = vpop.f32.mrf.mxu0
  %v755 = vadd.f32 0.0, %v754
  %756 = vdwg.mxu0
  %v757 = vsub.f32 %v176, %v678
  %v758 = vsub.f32 %v177, %v680
  %v759 = vsub.f32 %v178, %v683
  %v760 = vsub.f32 %v179, %v685
  %v761 = vsub.f32 %v180, %v688
  %v762 = vsub.f32 %v181, %v690
  %v763 = vsub.f32 %v182, %v693
  %v764 = vsub.f32 %v183, %v695
  %v765 = vsub.f32 %v184, %v698
  %v766 = vsub.f32 %v185, %v700
  %v767 = vsub.f32 %v186, %v703
  %v768 = vsub.f32 %v187, %v705
  %v769 = vsub.f32 %v188, %v708
  %v770 = vsub.f32 %v189, %v710
  %v771 = vsub.f32 %v190, %v713
  %v772 = vsub.f32 %v191, %v715
  %v773 = vsub.f32 %v192, %v718
  %v774 = vsub.f32 %v193, %v720
  %v775 = vsub.f32 %v194, %v723
  %v776 = vsub.f32 %v195, %v725
  %v777 = vsub.f32 %v196, %v728
  %v778 = vsub.f32 %v197, %v730
  %v779 = vsub.f32 %v198, %v733
  %v780 = vsub.f32 %v199, %v735
  %v781 = vsub.f32 %v200, %v738
  %v782 = vsub.f32 %v201, %v740
  %v783 = vsub.f32 %v202, %v743
  %v784 = vsub.f32 %v203, %v745
  %v785 = vsub.f32 %v204, %v748
  %v786 = vsub.f32 %v205, %v750
  %v787 = vsub.f32 %v206, %v753
  %v788 = vsub.f32 %v207, %v755
  %v789 = vmul.f32 %v757, %v757
  %v790 = vmul.f32 %v758, %v758
  %v791 = vmul.f32 %v759, %v759
  %v792 = vmul.f32 %v760, %v760
  %v793 = vmul.f32 %v761, %v761
  %v794 = vmul.f32 %v762, %v762
  %v795 = vmul.f32 %v763, %v763
  %v796 = vmul.f32 %v764, %v764
  %v797 = vmul.f32 %v765, %v765
  %v798 = vmul.f32 %v766, %v766
  %v799 = vmul.f32 %v767, %v767
  %v800 = vmul.f32 %v768, %v768
  %v801 = vmul.f32 %v769, %v769
  %v802 = vmul.f32 %v770, %v770
  %v803 = vmul.f32 %v771, %v771
  %v804 = vmul.f32 %v772, %v772
  %v805 = vmul.f32 %v773, %v773
  %v806 = vmul.f32 %v774, %v774
  %v807 = vmul.f32 %v775, %v775
  %v808 = vmul.f32 %v776, %v776
  %v809 = vmul.f32 %v777, %v777
  %v810 = vmul.f32 %v778, %v778
  %v811 = vmul.f32 %v779, %v779
  %v812 = vmul.f32 %v780, %v780
  %v813 = vmul.f32 %v781, %v781
  %v814 = vmul.f32 %v782, %v782
  %v815 = vmul.f32 %v783, %v783
  %v816 = vmul.f32 %v784, %v784
  %v817 = vmul.f32 %v785, %v785
  %v818 = vmul.f32 %v786, %v786
  %v819 = vmul.f32 %v787, %v787
  %v820 = vmul.f32 %v788, %v788
  %v821 = vpack.c.bf16 %v790, %v789
  %v822 = vpack.c.bf16 %v792, %v791
  %v823 = vpack.c.bf16 %v794, %v793
  %v824 = vpack.c.bf16 %v796, %v795
  %v825 = vpack.c.bf16 %v798, %v797
  %v826 = vpack.c.bf16 %v800, %v799
  %v827 = vpack.c.bf16 %v802, %v801
  %v828 = vpack.c.bf16 %v804, %v803
  %v829 = vpack.c.bf16 %v806, %v805
  %v830 = vpack.c.bf16 %v808, %v807
  %v831 = vpack.c.bf16 %v810, %v809
  %v832 = vpack.c.bf16 %v812, %v811
  %v833 = vpack.c.bf16 %v814, %v813
  %v834 = vpack.c.bf16 %v816, %v815
  %v835 = vpack.c.bf16 %v818, %v817
  %v836 = vpack.c.bf16 %v820, %v819
  %837 = vmatpush.bf16.msra.mxu0 %v659
  %838 = vmatpush.bf16.msra.mxu0 %v658
  %839 = vmatpush.bf16.msra.mxu0 %v657
  %840 = vmatpush.bf16.msra.mxu0 %v656
  %841 = vmatpush.bf16.msra.mxu0 %v655
  %842 = vmatpush.bf16.msra.mxu0 %v654
  %843 = vmatpush.bf16.msra.mxu0 %v653
  %844 = vmatpush.bf16.msra.mxu0 %v652
  %845 = vmatmul.bf16.gmra.mxu0 %v821
  %v846 = vpop.f32.mrf.mxu0
  %v847 = vadd.f32 1e-05, %v846
  %v848 = vpop.f32.mrf.mxu0
  %v849 = vadd.f32 1e-05, %v848
  %850 = vmatmul.bf16.gmra.mxu0 %v822
  %v851 = vpop.f32.mrf.mxu0
  %v852 = vadd.f32 1e-05, %v851
  %v853 = vpop.f32.mrf.mxu0
  %v854 = vadd.f32 1e-05, %v853
  %855 = vmatmul.bf16.gmra.mxu0 %v823
  %v856 = vpop.f32.mrf.mxu0
  %v857 = vadd.f32 1e-05, %v856
  %v858 = vpop.f32.mrf.mxu0
  %v859 = vadd.f32 1e-05, %v858
  %860 = vmatmul.bf16.gmra.mxu0 %v824
  %v861 = vpop.f32.mrf.mxu0
  %v862 = vadd.f32 1e-05, %v861
  %v863 = vpop.f32.mrf.mxu0
  %v864 = vadd.f32 1e-05, %v863
  %865 = vmatmul.bf16.gmra.mxu0 %v825
  %v866 = vpop.f32.mrf.mxu0
  %v867 = vadd.f32 1e-05, %v866
  %v868 = vpop.f32.mrf.mxu0
  %v869 = vadd.f32 1e-05, %v868
  %870 = vmatmul.bf16.gmra.mxu0 %v826
  %v871 = vpop.f32.mrf.mxu0
  %v872 = vadd.f32 1e-05, %v871
  %v873 = vpop.f32.mrf.mxu0
  %v874 = vadd.f32 1e-05, %v873
  %875 = vmatmul.bf16.gmra.mxu0 %v827
  %v876 = vpop.f32.mrf.mxu0
  %v877 = vadd.f32 1e-05, %v876
  %v878 = vpop.f32.mrf.mxu0
  %v879 = vadd.f32 1e-05, %v878
  %880 = vmatmul.bf16.gmra.mxu0 %v828
  %v881 = vpop.f32.mrf.mxu0
  %v882 = vadd.f32 1e-05, %v881
  %v883 = vpop.f32.mrf.mxu0
  %v884 = vadd.f32 1e-05, %v883
  %885 = vmatmul.bf16.gmra.mxu0 %v829
  %v886 = vpop.f32.mrf.mxu0
  %v887 = vadd.f32 1e-05, %v886
  %v888 = vpop.f32.mrf.mxu0
  %v889 = vadd.f32 1e-05, %v888
  %890 = vmatmul.bf16.gmra.mxu0 %v830
  %v891 = vpop.f32.mrf.mxu0
  %v892 = vadd.f32 1e-05, %v891
  %v893 = vpop.f32.mrf.mxu0
  %v894 = vadd.f32 1e-05, %v893
  %895 = vmatmul.bf16.gmra.mxu0 %v831
  %v896 = vpop.f32.mrf.mxu0
  %v897 = vadd.f32 1e-05, %v896
  %v898 = vpop.f32.mrf.mxu0
  %v899 = vadd.f32 1e-05, %v898
  %900 = vmatmul.bf16.gmra.mxu0 %v832
  %v901 = vpop.f32.mrf.mxu0
  %v902 = vadd.f32 1e-05, %v901
  %v903 = vpop.f32.mrf.mxu0
  %v904 = vadd.f32 1e-05, %v903
  %905 = vmatmul.bf16.gmra.mxu0 %v833
  %v906 = vpop.f32.mrf.mxu0
  %v907 = vadd.f32 1e-05, %v906
  %v908 = vpop.f32.mrf.mxu0
  %v909 = vadd.f32 1e-05, %v908
  %910 = vmatmul.bf16.gmra.mxu0 %v834
  %v911 = vpop.f32.mrf.mxu0
  %v912 = vadd.f32 1e-05, %v911
  %v913 = vpop.f32.mrf.mxu0
  %v914 = vadd.f32 1e-05, %v913
  %915 = vmatmul.bf16.gmra.mxu0 %v835
  %v916 = vpop.f32.mrf.mxu0
  %v917 = vadd.f32 1e-05, %v916
  %v918 = vpop.f32.mrf.mxu0
  %v919 = vadd.f32 1e-05, %v918
  %920 = vmatmul.bf16.gmra.mxu0 %v836
  %v921 = vpop.f32.mrf.mxu0
  %v922 = vadd.f32 1e-05, %v921
  %v923 = vpop.f32.mrf.mxu0
  %v924 = vadd.f32 1e-05, %v923
  %925 = vdwg.mxu0
  %v926 = vrsqrt.pop %v847
  %v927 = vmul.f32 %v926, %v847
  %v928 = vmul.f32 %v927, %v926
  %v929 = vmul.f32 0.5, %v928
  %v930 = vsub.f32 1.5, %v929
  %v931 = vmul.f32 %v926, %v930
  %vm932 = vweird.f32 %v847
  %vm933 = vweird.f32 %v926
  %vm934 = vmor %vm932, %vm933
  %v935 = vsel %vm934, %v926, %v931
  %v936 = vrsqrt.pop %v849
  %v937 = vmul.f32 %v936, %v849
  %v938 = vmul.f32 %v937, %v936
  %v939 = vmul.f32 0.5, %v938
  %v940 = vsub.f32 1.5, %v939
  %v941 = vmul.f32 %v936, %v940
  %vm942 = vweird.f32 %v849
  %vm943 = vweird.f32 %v936
  %vm944 = vmor %vm942, %vm943
  %v945 = vsel %vm944, %v936, %v941
  %v946 = vrsqrt.pop %v852
  %v947 = vmul.f32 %v946, %v852
  %v948 = vmul.f32 %v947, %v946
  %v949 = vmul.f32 0.5, %v948
  %v950 = vsub.f32 1.5, %v949
  %v951 = vmul.f32 %v946, %v950
  %vm952 = vweird.f32 %v852
  %vm953 = vweird.f32 %v946
  %vm954 = vmor %vm952, %vm953
  %v955 = vsel %vm954, %v946, %v951
  %v956 = vrsqrt.pop %v854
  %v957 = vmul.f32 %v956, %v854
  %v958 = vmul.f32 %v957, %v956
  %v959 = vmul.f32 0.5, %v958
  %v960 = vsub.f32 1.5, %v959
  %v961 = vmul.f32 %v956, %v960
  %vm962 = vweird.f32 %v854
  %vm963 = vweird.f32 %v956
  %vm964 = vmor %vm962, %vm963
  %v965 = vsel %vm964, %v956, %v961
  %v966 = vrsqrt.pop %v857
  %v967 = vmul.f32 %v966, %v857
  %v968 = vmul.f32 %v967, %v966
  %v969 = vmul.f32 0.5, %v968
  %v970 = vsub.f32 1.5, %v969
  %v971 = vmul.f32 %v966, %v970
  %vm972 = vweird.f32 %v857
  %vm973 = vweird.f32 %v966
  %vm974 = vmor %vm972, %vm973
  %v975 = vsel %vm974, %v966, %v971
  %v976 = vrsqrt.pop %v859
  %v977 = vmul.f32 %v976, %v859
  %v978 = vmul.f32 %v977, %v976
  %v979 = vmul.f32 0.5, %v978
  %v980 = vsub.f32 1.5, %v979
  %v981 = vmul.f32 %v976, %v980
  %vm982 = vweird.f32 %v859
  %vm983 = vweird.f32 %v976
  %vm984 = vmor %vm982, %vm983
  %v985 = vsel %vm984, %v976, %v981
  %v986 = vrsqrt.pop %v862
  %v987 = vmul.f32 %v986, %v862
  %v988 = vmul.f32 %v987, %v986
  %v989 = vmul.f32 0.5, %v988
  %v990 = vsub.f32 1.5, %v989
  %v991 = vmul.f32 %v986, %v990
  %vm992 = vweird.f32 %v862
  %vm993 = vweird.f32 %v986
  %vm994 = vmor %vm992, %vm993
  %v995 = vsel %vm994, %v986, %v991
  %v996 = vrsqrt.pop %v864
  %v997 = vmul.f32 %v996, %v864
  %v998 = vmul.f32 %v997, %v996
  %v999 = vmul.f32 0.5, %v998
  %v1000 = vsub.f32 1.5, %v999
  %v1001 = vmul.f32 %v996, %v1000
  %vm1002 = vweird.f32 %v864
  %vm1003 = vweird.f32 %v996
  %vm1004 = vmor %vm1002, %vm1003
  %v1005 = vsel %vm1004, %v996, %v1001
  %v1006 = vrsqrt.pop %v867
  %v1007 = vmul.f32 %v1006, %v867
  %v1008 = vmul.f32 %v1007, %v1006
  %v1009 = vmul.f32 0.5, %v1008
  %v1010 = vsub.f32 1.5, %v1009
  %v1011 = vmul.f32 %v1006, %v1010
  %vm1012 = vweird.f32 %v867
  %vm1013 = vweird.f32 %v1006
  %vm1014 = vmor %vm1012, %vm1013
  %v1015 = vsel %vm1014, %v1006, %v1011
  %v1016 = vrsqrt.pop %v869
  %v1017 = vmul.f32 %v1016, %v869
  %v1018 = vmul.f32 %v1017, %v1016
  %v1019 = vmul.f32 0.5, %v1018
  %v1020 = vsub.f32 1.5, %v1019
  %v1021 = vmul.f32 %v1016, %v1020
  %vm1022 = vweird.f32 %v869
  %vm1023 = vweird.f32 %v1016
  %vm1024 = vmor %vm1022, %vm1023
  %v1025 = vsel %vm1024, %v1016, %v1021
  %v1026 = vrsqrt.pop %v872
  %v1027 = vmul.f32 %v1026, %v872
  %v1028 = vmul.f32 %v1027, %v1026
  %v1029 = vmul.f32 0.5, %v1028
  %v1030 = vsub.f32 1.5, %v1029
  %v1031 = vmul.f32 %v1026, %v1030
  %vm1032 = vweird.f32 %v872
  %vm1033 = vweird.f32 %v1026
  %vm1034 = vmor %vm1032, %vm1033
  %v1035 = vsel %vm1034, %v1026, %v1031
  %v1036 = vrsqrt.pop %v874
  %v1037 = vmul.f32 %v1036, %v874
  %v1038 = vmul.f32 %v1037, %v1036
  %v1039 = vmul.f32 0.5, %v1038
  %v1040 = vsub.f32 1.5, %v1039
  %v1041 = vmul.f32 %v1036, %v1040
  %vm1042 = vweird.f32 %v874
  %vm1043 = vweird.f32 %v1036
  %vm1044 = vmor %vm1042, %vm1043
  %v1045 = vsel %vm1044, %v1036, %v1041
  %v1046 = vrsqrt.pop %v877
  %v1047 = vmul.f32 %v1046, %v877
  %v1048 = vmul.f32 %v1047, %v1046
  %v1049 = vmul.f32 0.5, %v1048
  %v1050 = vsub.f32 1.5, %v1049
  %v1051 = vmul.f32 %v1046, %v1050
  %vm1052 = vweird.f32 %v877
  %vm1053 = vweird.f32 %v1046
  %vm1054 = vmor %vm1052, %vm1053
  %v1055 = vsel %vm1054, %v1046, %v1051
  %v1056 = vrsqrt.pop %v879
  %v1057 = vmul.f32 %v1056, %v879
  %v1058 = vmul.f32 %v1057, %v1056
  %v1059 = vmul.f32 0.5, %v1058
  %v1060 = vsub.f32 1.5, %v1059
  %v1061 = vmul.f32 %v1056, %v1060
  %vm1062 = vweird.f32 %v879
  %vm1063 = vweird.f32 %v1056
  %vm1064 = vmor %vm1062, %vm1063
  %v1065 = vsel %vm1064, %v1056, %v1061
  %v1066 = vrsqrt.pop %v882
  %v1067 = vmul.f32 %v1066, %v882
  %v1068 = vmul.f32 %v1067, %v1066
  %v1069 = vmul.f32 0.5, %v1068
  %v1070 = vsub.f32 1.5, %v1069
  %v1071 = vmul.f32 %v1066, %v1070
  %vm1072 = vweird.f32 %v882
  %vm1073 = vweird.f32 %v1066
  %vm1074 = vmor %vm1072, %vm1073
  %v1075 = vsel %vm1074, %v1066, %v1071
  %v1076 = vrsqrt.pop %v884
  %v1077 = vmul.f32 %v1076, %v884
  %v1078 = vmul.f32 %v1077, %v1076
  %v1079 = vmul.f32 0.5, %v1078
  %v1080 = vsub.f32 1.5, %v1079
  %v1081 = vmul.f32 %v1076, %v1080
  %vm1082 = vweird.f32 %v884
  %vm1083 = vweird.f32 %v1076
  %vm1084 = vmor %vm1082, %vm1083
  %v1085 = vsel %vm1084, %v1076, %v1081
  %v1086 = vrsqrt.pop %v887
  %v1087 = vmul.f32 %v1086, %v887
  %v1088 = vmul.f32 %v1087, %v1086
  %v1089 = vmul.f32 0.5, %v1088
  %v1090 = vsub.f32 1.5, %v1089
  %v1091 = vmul.f32 %v1086, %v1090
  %vm1092 = vweird.f32 %v887
  %vm1093 = vweird.f32 %v1086
  %vm1094 = vmor %vm1092, %vm1093
  %v1095 = vsel %vm1094, %v1086, %v1091
  %v1096 = vrsqrt.pop %v889
  %v1097 = vmul.f32 %v1096, %v889
  %v1098 = vmul.f32 %v1097, %v1096
  %v1099 = vmul.f32 0.5, %v1098
  %v1100 = vsub.f32 1.5, %v1099
  %v1101 = vmul.f32 %v1096, %v1100
  %vm1102 = vweird.f32 %v889
  %vm1103 = vweird.f32 %v1096
  %vm1104 = vmor %vm1102, %vm1103
  %v1105 = vsel %vm1104, %v1096, %v1101
  %v1106 = vrsqrt.pop %v892
  %v1107 = vmul.f32 %v1106, %v892
  %v1108 = vmul.f32 %v1107, %v1106
  %v1109 = vmul.f32 0.5, %v1108
  %v1110 = vsub.f32 1.5, %v1109
  %v1111 = vmul.f32 %v1106, %v1110
  %vm1112 = vweird.f32 %v892
  %vm1113 = vweird.f32 %v1106
  %vm1114 = vmor %vm1112, %vm1113
  %v1115 = vsel %vm1114, %v1106, %v1111
  %v1116 = vrsqrt.pop %v894
  %v1117 = vmul.f32 %v1116, %v894
  %v1118 = vmul.f32 %v1117, %v1116
  %v1119 = vmul.f32 0.5, %v1118
  %v1120 = vsub.f32 1.5, %v1119
  %v1121 = vmul.f32 %v1116, %v1120
  %vm1122 = vweird.f32 %v894
  %vm1123 = vweird.f32 %v1116
  %vm1124 = vmor %vm1122, %vm1123
  %v1125 = vsel %vm1124, %v1116, %v1121
  %v1126 = vrsqrt.pop %v897
  %v1127 = vmul.f32 %v1126, %v897
  %v1128 = vmul.f32 %v1127, %v1126
  %v1129 = vmul.f32 0.5, %v1128
  %v1130 = vsub.f32 1.5, %v1129
  %v1131 = vmul.f32 %v1126, %v1130
  %vm1132 = vweird.f32 %v897
  %vm1133 = vweird.f32 %v1126
  %vm1134 = vmor %vm1132, %vm1133
  %v1135 = vsel %vm1134, %v1126, %v1131
  %v1136 = vrsqrt.pop %v899
  %v1137 = vmul.f32 %v1136, %v899
  %v1138 = vmul.f32 %v1137, %v1136
  %v1139 = vmul.f32 0.5, %v1138
  %v1140 = vsub.f32 1.5, %v1139
  %v1141 = vmul.f32 %v1136, %v1140
  %vm1142 = vweird.f32 %v899
  %vm1143 = vweird.f32 %v1136
  %vm1144 = vmor %vm1142, %vm1143
  %v1145 = vsel %vm1144, %v1136, %v1141
  %v1146 = vrsqrt.pop %v902
  %v1147 = vmul.f32 %v1146, %v902
  %v1148 = vmul.f32 %v1147, %v1146
  %v1149 = vmul.f32 0.5, %v1148
  %v1150 = vsub.f32 1.5, %v1149
  %v1151 = vmul.f32 %v1146, %v1150
  %vm1152 = vweird.f32 %v902
  %vm1153 = vweird.f32 %v1146
  %vm1154 = vmor %vm1152, %vm1153
  %v1155 = vsel %vm1154, %v1146, %v1151
  %v1156 = vrsqrt.pop %v904
  %v1157 = vmul.f32 %v1156, %v904
  %v1158 = vmul.f32 %v1157, %v1156
  %v1159 = vmul.f32 0.5, %v1158
  %v1160 = vsub.f32 1.5, %v1159
  %v1161 = vmul.f32 %v1156, %v1160
  %vm1162 = vweird.f32 %v904
  %vm1163 = vweird.f32 %v1156
  %vm1164 = vmor %vm1162, %vm1163
  %v1165 = vsel %vm1164, %v1156, %v1161
  %v1166 = vrsqrt.pop %v907
  %v1167 = vmul.f32 %v1166, %v907
  %v1168 = vmul.f32 %v1167, %v1166
  %v1169 = vmul.f32 0.5, %v1168
  %v1170 = vsub.f32 1.5, %v1169
  %v1171 = vmul.f32 %v1166, %v1170
  %vm1172 = vweird.f32 %v907
  %vm1173 = vweird.f32 %v1166
  %vm1174 = vmor %vm1172, %vm1173
  %v1175 = vsel %vm1174, %v1166, %v1171
  %v1176 = vrsqrt.pop %v909
  %v1177 = vmul.f32 %v1176, %v909
  %v1178 = vmul.f32 %v1177, %v1176
  %v1179 = vmul.f32 0.5, %v1178
  %v1180 = vsub.f32 1.5, %v1179
  %v1181 = vmul.f32 %v1176, %v1180
  %vm1182 = vweird.f32 %v909
  %vm1183 = vweird.f32 %v1176
  %vm1184 = vmor %vm1182, %vm1183
  %v1185 = vsel %vm1184, %v1176, %v1181
  %v1186 = vrsqrt.pop %v912
  %v1187 = vmul.f32 %v1186, %v912
  %v1188 = vmul.f32 %v1187, %v1186
  %v1189 = vmul.f32 0.5, %v1188
  %v1190 = vsub.f32 1.5, %v1189
  %v1191 = vmul.f32 %v1186, %v1190
  %vm1192 = vweird.f32 %v912
  %vm1193 = vweird.f32 %v1186
  %vm1194 = vmor %vm1192, %vm1193
  %v1195 = vsel %vm1194, %v1186, %v1191
  %v1196 = vrsqrt.pop %v914
  %v1197 = vmul.f32 %v1196, %v914
  %v1198 = vmul.f32 %v1197, %v1196
  %v1199 = vmul.f32 0.5, %v1198
  %v1200 = vsub.f32 1.5, %v1199
  %v1201 = vmul.f32 %v1196, %v1200
  %vm1202 = vweird.f32 %v914
  %vm1203 = vweird.f32 %v1196
  %vm1204 = vmor %vm1202, %vm1203
  %v1205 = vsel %vm1204, %v1196, %v1201
  %v1206 = vrsqrt.pop %v917
  %v1207 = vmul.f32 %v1206, %v917
  %v1208 = vmul.f32 %v1207, %v1206
  %v1209 = vmul.f32 0.5, %v1208
  %v1210 = vsub.f32 1.5, %v1209
  %v1211 = vmul.f32 %v1206, %v1210
  %vm1212 = vweird.f32 %v917
  %vm1213 = vweird.f32 %v1206
  %vm1214 = vmor %vm1212, %vm1213
  %v1215 = vsel %vm1214, %v1206, %v1211
  %v1216 = vrsqrt.pop %v919
  %v1217 = vmul.f32 %v1216, %v919
  %v1218 = vmul.f32 %v1217, %v1216
  %v1219 = vmul.f32 0.5, %v1218
  %v1220 = vsub.f32 1.5, %v1219
  %v1221 = vmul.f32 %v1216, %v1220
  %vm1222 = vweird.f32 %v919
  %vm1223 = vweird.f32 %v1216
  %vm1224 = vmor %vm1222, %vm1223
  %v1225 = vsel %vm1224, %v1216, %v1221
  %v1226 = vrsqrt.pop %v922
  %v1227 = vmul.f32 %v1226, %v922
  %v1228 = vmul.f32 %v1227, %v1226
  %v1229 = vmul.f32 0.5, %v1228
  %v1230 = vsub.f32 1.5, %v1229
  %v1231 = vmul.f32 %v1226, %v1230
  %vm1232 = vweird.f32 %v922
  %vm1233 = vweird.f32 %v1226
  %vm1234 = vmor %vm1232, %vm1233
  %v1235 = vsel %vm1234, %v1226, %v1231
  %v1236 = vrsqrt.pop %v924
  %v1237 = vmul.f32 %v1236, %v924
  %v1238 = vmul.f32 %v1237, %v1236
  %v1239 = vmul.f32 0.5, %v1238
  %v1240 = vsub.f32 1.5, %v1239
  %v1241 = vmul.f32 %v1236, %v1240
  %vm1242 = vweird.f32 %v924
  %vm1243 = vweird.f32 %v1236
  %vm1244 = vmor %vm1242, %vm1243
  %v1245 = vsel %vm1244, %v1236, %v1241
  %v1246 = vmul.f32 %v757, %v935
  %v1247 = vmul.f32 %v758, %v945
  %v1248 = vmul.f32 %v759, %v955
  %v1249 = vmul.f32 %v760, %v965
  %v1250 = vmul.f32 %v761, %v975
  %v1251 = vmul.f32 %v762, %v985
  %v1252 = vmul.f32 %v763, %v995
  %v1253 = vmul.f32 %v764, %v1005
  %v1254 = vmul.f32 %v765, %v1015
  %v1255 = vmul.f32 %v766, %v1025
  %v1256 = vmul.f32 %v767, %v1035
  %v1257 = vmul.f32 %v768, %v1045
  %v1258 = vmul.f32 %v769, %v1055
  %v1259 = vmul.f32 %v770, %v1065
  %v1260 = vmul.f32 %v771, %v1075
  %v1261 = vmul.f32 %v772, %v1085
  %v1262 = vmul.f32 %v773, %v1095
  %v1263 = vmul.f32 %v774, %v1105
  %v1264 = vmul.f32 %v775, %v1115
  %v1265 = vmul.f32 %v776, %v1125
  %v1266 = vmul.f32 %v777, %v1135
  %v1267 = vmul.f32 %v778, %v1145
  %v1268 = vmul.f32 %v779, %v1155
  %v1269 = vmul.f32 %v780, %v1165
  %v1270 = vmul.f32 %v781, %v1175
  %v1271 = vmul.f32 %v782, %v1185
  %v1272 = vmul.f32 %v783, %v1195
  %v1273 = vmul.f32 %v784, %v1205
  %v1274 = vmul.f32 %v785, %v1215
  %v1275 = vmul.f32 %v786, %v1225
  %v1276 = vmul.f32 %v787, %v1235
  %v1277 = vmul.f32 %v788, %v1245
  %v1278 = vld [vmem:[%s2] sm:$0xf]
  %v1279 = vld [vmem:[%s2 + $0x4] sm:$0xf]
  %v1280 = vunpack.c.l.bf16 %v1278
  %v1281 = vunpack.c.l.bf16 %v1279
  %v1284 = vrot.slane %v1280, 1
  %v1285 = vrot.slane %v1280, 2
  %v1286 = vrot.slane %v1280, 3
  %v1287 = vrot.slane %v1280, 4
  %v1288 = vrot.slane %v1280, 5
  %v1289 = vrot.slane %v1280, 6
  %v1290 = vrot.slane %v1280, 7
  %v1291 = vrot.slane %v1281, 1
  %v1292 = vrot.slane %v1281, 2
  %v1293 = vrot.slane %v1281, 3
  %v1294 = vrot.slane %v1281, 4
  %v1295 = vrot.slane %v1281, 5
  %v1296 = vrot.slane %v1281, 6
  %v1297 = vrot.slane %v1281, 7
  %v1298 = vperm.slane %v1280, 0
  %v1299 = vperm.slane %v1284, 0
  %v1300 = vperm.slane %v1285, 0
  %v1301 = vperm.slane %v1286, 0
  %v1302 = vperm.slane %v1287, 0
  %v1303 = vperm.slane %v1288, 0
  %v1304 = vperm.slane %v1289, 0
  %v1305 = vperm.slane %v1290, 0
  %v1306 = vperm.slane %v1281, 0
  %v1307 = vperm.slane %v1291, 0
  %v1308 = vperm.slane %v1292, 0
  %v1309 = vperm.slane %v1293, 0
  %v1310 = vperm.slane %v1294, 0
  %v1311 = vperm.slane %v1295, 0
  %v1312 = vperm.slane %v1296, 0
  %v1313 = vperm.slane %v1297, 0
  %v1330 = vmul.f32 %v1246, %v1298
  %v1331 = vmul.f32 %v1247, %v1299
  %v1332 = vmul.f32 %v1248, %v1300
  %v1333 = vmul.f32 %v1249, %v1301
  %v1334 = vmul.f32 %v1250, %v1302
  %v1335 = vmul.f32 %v1251, %v1303
  %v1336 = vmul.f32 %v1252, %v1304
  %v1337 = vmul.f32 %v1253, %v1305
  %v1338 = vmul.f32 %v1254, %v1306
  %v1339 = vmul.f32 %v1255, %v1307
  %v1340 = vmul.f32 %v1256, %v1308
  %v1341 = vmul.f32 %v1257, %v1309
  %v1342 = vmul.f32 %v1258, %v1310
  %v1343 = vmul.f32 %v1259, %v1311
  %v1344 = vmul.f32 %v1260, %v1312
  %v1345 = vmul.f32 %v1261, %v1313
  %v1346 = vmul.f32 %v1262, %v1298
  %v1347 = vmul.f32 %v1263, %v1299
  %v1348 = vmul.f32 %v1264, %v1300
  %v1349 = vmul.f32 %v1265, %v1301
  %v1350 = vmul.f32 %v1266, %v1302
  %v1351 = vmul.f32 %v1267, %v1303
  %v1352 = vmul.f32 %v1268, %v1304
  %v1353 = vmul.f32 %v1269, %v1305
  %v1354 = vmul.f32 %v1270, %v1306
  %v1355 = vmul.f32 %v1271, %v1307
  %v1356 = vmul.f32 %v1272, %v1308
  %v1357 = vmul.f32 %v1273, %v1309
  %v1358 = vmul.f32 %v1274, %v1310
  %v1359 = vmul.f32 %v1275, %v1311
  %v1360 = vmul.f32 %v1276, %v1312
  %v1361 = vmul.f32 %v1277, %v1313
  %v1362 = vpack.c.bf16 %v1331, %v1330
  %v1363 = vpack.c.bf16 %v1333, %v1332
  %v1364 = vpack.c.bf16 %v1335, %v1334
  %v1365 = vpack.c.bf16 %v1337, %v1336
  %v1366 = vpack.c.bf16 %v1339, %v1338
  %v1367 = vpack.c.bf16 %v1341, %v1340
  %v1368 = vpack.c.bf16 %v1343, %v1342
  %v1369 = vpack.c.bf16 %v1345, %v1344
  %v1370 = vpack.c.bf16 %v1347, %v1346
  %v1371 = vpack.c.bf16 %v1349, %v1348
  %v1372 = vpack.c.bf16 %v1351, %v1350
  %v1373 = vpack.c.bf16 %v1353, %v1352
  %v1374 = vpack.c.bf16 %v1355, %v1354
  %v1375 = vpack.c.bf16 %v1357, %v1356
  %v1376 = vpack.c.bf16 %v1359, %v1358
  %v1377 = vpack.c.bf16 %v1361, %v1360
  %1378 = vmatpush.bf16.msra.mxu0 %v659
  %1379 = vmatpush.bf16.msra.mxu0 %v658
  %1380 = vmatpush.bf16.msra.mxu0 %v657
  %1381 = vmatpush.bf16.msra.mxu0 %v656
  %1382 = vmatpush.bf16.msra.mxu0 %v655
  %1383 = vmatpush.bf16.msra.mxu0 %v654
  %1384 = vmatpush.bf16.msra.mxu0 %v653
  %1385 = vmatpush.bf16.msra.mxu0 %v652
  %1386 = vmatmul.bf16.gmra.mxu0 %v1362
  %v1387 = vpop.f32.mrf.mxu0
  %v1388 = vadd.f32 0.0, %v1387
  %v1389 = vpop.f32.mrf.mxu0
  %v1390 = vadd.f32 0.0, %v1389
  %1391 = vmatmul.bf16.gmra.mxu0 %v1363
  %v1392 = vpop.f32.mrf.mxu0
  %v1393 = vadd.f32 0.0, %v1392
  %v1394 = vpop.f32.mrf.mxu0
  %v1395 = vadd.f32 0.0, %v1394
  %1396 = vmatmul.bf16.gmra.mxu0 %v1364
  %v1397 = vpop.f32.mrf.mxu0
  %v1398 = vadd.f32 0.0, %v1397
  %v1399 = vpop.f32.mrf.mxu0
  %v1400 = vadd.f32 0.0, %v1399
  %1401 = vmatmul.bf16.gmra.mxu0 %v1365
  %v1402 = vpop.f32.mrf.mxu0
  %v1403 = vadd.f32 0.0, %v1402
  %v1404 = vpop.f32.mrf.mxu0
  %v1405 = vadd.f32 0.0, %v1404
  %1406 = vmatmul.bf16.gmra.mxu0 %v1366
  %v1407 = vpop.f32.mrf.mxu0
  %v1408 = vadd.f32 0.0, %v1407
  %v1409 = vpop.f32.mrf.mxu0
  %v1410 = vadd.f32 0.0, %v1409
  %1411 = vmatmul.bf16.gmra.mxu0 %v1367
  %v1412 = vpop.f32.mrf.mxu0
  %v1413 = vadd.f32 0.0, %v1412
  %v1414 = vpop.f32.mrf.mxu0
  %v1415 = vadd.f32 0.0, %v1414
  %1416 = vmatmul.bf16.gmra.mxu0 %v1368
  %v1417 = vpop.f32.mrf.mxu0
  %v1418 = vadd.f32 0.0, %v1417
  %v1419 = vpop.f32.mrf.mxu0
  %v1420 = vadd.f32 0.0, %v1419
  %1421 = vmatmul.bf16.gmra.mxu0 %v1369
  %v1422 = vpop.f32.mrf.mxu0
  %v1423 = vadd.f32 0.0, %v1422
  %v1424 = vpop.f32.mrf.mxu0
  %v1425 = vadd.f32 0.0, %v1424
  %1426 = vmatmul.bf16.gmra.mxu0 %v1370
  %v1427 = vpop.f32.mrf.mxu0
  %v1428 = vadd.f32 0.0, %v1427
  %v1429 = vpop.f32.mrf.mxu0
  %v1430 = vadd.f32 0.0, %v1429
  %1431 = vmatmul.bf16.gmra.mxu0 %v1371
  %v1432 = vpop.f32.mrf.mxu0
  %v1433 = vadd.f32 0.0, %v1432
  %v1434 = vpop.f32.mrf.mxu0
  %v1435 = vadd.f32 0.0, %v1434
  %1436 = vmatmul.bf16.gmra.mxu0 %v1372
  %v1437 = vpop.f32.mrf.mxu0
  %v1438 = vadd.f32 0.0, %v1437
  %v1439 = vpop.f32.mrf.mxu0
  %v1440 = vadd.f32 0.0, %v1439
  %1441 = vmatmul.bf16.gmra.mxu0 %v1373
  %v1442 = vpop.f32.mrf.mxu0
  %v1443 = vadd.f32 0.0, %v1442
  %v1444 = vpop.f32.mrf.mxu0
  %v1445 = vadd.f32 0.0, %v1444
  %1446 = vmatmul.bf16.gmra.mxu0 %v1374
  %v1447 = vpop.f32.mrf.mxu0
  %v1448 = vadd.f32 0.0, %v1447
  %v1449 = vpop.f32.mrf.mxu0
  %v1450 = vadd.f32 0.0, %v1449
  %1451 = vmatmul.bf16.gmra.mxu0 %v1375
  %v1452 = vpop.f32.mrf.mxu0
  %v1453 = vadd.f32 0.0, %v1452
  %v1454 = vpop.f32.mrf.mxu0
  %v1455 = vadd.f32 0.0, %v1454
  %1456 = vmatmul.bf16.gmra.mxu0 %v1376
  %v1457 = vpop.f32.mrf.mxu0
  %v1458 = vadd.f32 0.0, %v1457
  %v1459 = vpop.f32.mrf.mxu0
  %v1460 = vadd.f32 0.0, %v1459
  %1461 = vmatmul.bf16.gmra.mxu0 %v1377
  %v1462 = vpop.f32.mrf.mxu0
  %v1463 = vadd.f32 0.0, %v1462
  %v1464 = vpop.f32.mrf.mxu0
  %v1465 = vadd.f32 0.0, %v1464
  %1466 = vdwg.mxu0
  %v1467 = vmul.f32 %v1388, 5.656854
  %v1468 = vmul.f32 %v1390, 5.656854
  %v1469 = vmul.f32 %v1393, 5.656854
  %v1470 = vmul.f32 %v1395, 5.656854
  %v1471 = vmul.f32 %v1398, 5.656854
  %v1472 = vmul.f32 %v1400, 5.656854
  %v1473 = vmul.f32 %v1403, 5.656854
  %v1474 = vmul.f32 %v1405, 5.656854
  %v1475 = vmul.f32 %v1408, 5.656854
  %v1476 = vmul.f32 %v1410, 5.656854
  %v1477 = vmul.f32 %v1413, 5.656854
  %v1478 = vmul.f32 %v1415, 5.656854
  %v1479 = vmul.f32 %v1418, 5.656854
  %v1480 = vmul.f32 %v1420, 5.656854
  %v1481 = vmul.f32 %v1423, 5.656854
  %v1482 = vmul.f32 %v1425, 5.656854
  %v1483 = vmul.f32 %v1428, 5.656854
  %v1484 = vmul.f32 %v1430, 5.656854
  %v1485 = vmul.f32 %v1433, 5.656854
  %v1486 = vmul.f32 %v1435, 5.656854
  %v1487 = vmul.f32 %v1438, 5.656854
  %v1488 = vmul.f32 %v1440, 5.656854
  %v1489 = vmul.f32 %v1443, 5.656854
  %v1490 = vmul.f32 %v1445, 5.656854
  %v1491 = vmul.f32 %v1448, 5.656854
  %v1492 = vmul.f32 %v1450, 5.656854
  %v1493 = vmul.f32 %v1453, 5.656854
  %v1494 = vmul.f32 %v1455, 5.656854
  %v1495 = vmul.f32 %v1458, 5.656854
  %v1496 = vmul.f32 %v1460, 5.656854
  %v1497 = vmul.f32 %v1463, 5.656854
  %v1498 = vmul.f32 %v1465, 5.656854
  %v1499 = vrot.slane %v1467, 4
  %v1500 = vmax.f32 %v1467, %v1499
  %v1501 = vrot.slane %v1500, 2
  %v1502 = vmax.f32 %v1500, %v1501
  %v1503 = vrot.slane %v1502, 1
  %v1504 = vmax.f32 %v1502, %v1503
  %v1505 = vrot.slane %v1468, 4
  %v1506 = vmax.f32 %v1468, %v1505
  %v1507 = vrot.slane %v1506, 2
  %v1508 = vmax.f32 %v1506, %v1507
  %v1509 = vrot.slane %v1508, 1
  %v1510 = vmax.f32 %v1508, %v1509
  %v1511 = vrot.slane %v1469, 4
  %v1512 = vmax.f32 %v1469, %v1511
  %v1513 = vrot.slane %v1512, 2
  %v1514 = vmax.f32 %v1512, %v1513
  %v1515 = vrot.slane %v1514, 1
  %v1516 = vmax.f32 %v1514, %v1515
  %v1517 = vrot.slane %v1470, 4
  %v1518 = vmax.f32 %v1470, %v1517
  %v1519 = vrot.slane %v1518, 2
  %v1520 = vmax.f32 %v1518, %v1519
  %v1521 = vrot.slane %v1520, 1
  %v1522 = vmax.f32 %v1520, %v1521
  %v1523 = vrot.slane %v1471, 4
  %v1524 = vmax.f32 %v1471, %v1523
  %v1525 = vrot.slane %v1524, 2
  %v1526 = vmax.f32 %v1524, %v1525
  %v1527 = vrot.slane %v1526, 1
  %v1528 = vmax.f32 %v1526, %v1527
  %v1529 = vrot.slane %v1472, 4
  %v1530 = vmax.f32 %v1472, %v1529
  %v1531 = vrot.slane %v1530, 2
  %v1532 = vmax.f32 %v1530, %v1531
  %v1533 = vrot.slane %v1532, 1
  %v1534 = vmax.f32 %v1532, %v1533
  %v1535 = vrot.slane %v1473, 4
  %v1536 = vmax.f32 %v1473, %v1535
  %v1537 = vrot.slane %v1536, 2
  %v1538 = vmax.f32 %v1536, %v1537
  %v1539 = vrot.slane %v1538, 1
  %v1540 = vmax.f32 %v1538, %v1539
  %v1541 = vrot.slane %v1474, 4
  %v1542 = vmax.f32 %v1474, %v1541
  %v1543 = vrot.slane %v1542, 2
  %v1544 = vmax.f32 %v1542, %v1543
  %v1545 = vrot.slane %v1544, 1
  %v1546 = vmax.f32 %v1544, %v1545
  %v1547 = vrot.slane %v1475, 4
  %v1548 = vmax.f32 %v1475, %v1547
  %v1549 = vrot.slane %v1548, 2
  %v1550 = vmax.f32 %v1548, %v1549
  %v1551 = vrot.slane %v1550, 1
  %v1552 = vmax.f32 %v1550, %v1551
  %v1553 = vrot.slane %v1476, 4
  %v1554 = vmax.f32 %v1476, %v1553
  %v1555 = vrot.slane %v1554, 2
  %v1556 = vmax.f32 %v1554, %v1555
  %v1557 = vrot.slane %v1556, 1
  %v1558 = vmax.f32 %v1556, %v1557
  %v1559 = vrot.slane %v1477, 4
  %v1560 = vmax.f32 %v1477, %v1559
  %v1561 = vrot.slane %v1560, 2
  %v1562 = vmax.f32 %v1560, %v1561
  %v1563 = vrot.slane %v1562, 1
  %v1564 = vmax.f32 %v1562, %v1563
  %v1565 = vrot.slane %v1478, 4
  %v1566 = vmax.f32 %v1478, %v1565
  %v1567 = vrot.slane %v1566, 2
  %v1568 = vmax.f32 %v1566, %v1567
  %v1569 = vrot.slane %v1568, 1
  %v1570 = vmax.f32 %v1568, %v1569
  %v1571 = vrot.slane %v1479, 4
  %v1572 = vmax.f32 %v1479, %v1571
  %v1573 = vrot.slane %v1572, 2
  %v1574 = vmax.f32 %v1572, %v1573
  %v1575 = vrot.slane %v1574, 1
  %v1576 = vmax.f32 %v1574, %v1575
  %v1577 = vrot.slane %v1480, 4
  %v1578 = vmax.f32 %v1480, %v1577
  %v1579 = vrot.slane %v1578, 2
  %v1580 = vmax.f32 %v1578, %v1579
  %v1581 = vrot.slane %v1580, 1
  %v1582 = vmax.f32 %v1580, %v1581
  %v1583 = vrot.slane %v1481, 4
  %v1584 = vmax.f32 %v1481, %v1583
  %v1585 = vrot.slane %v1584, 2
  %v1586 = vmax.f32 %v1584, %v1585
  %v1587 = vrot.slane %v1586, 1
  %v1588 = vmax.f32 %v1586, %v1587
  %v1589 = vrot.slane %v1482, 4
  %v1590 = vmax.f32 %v1482, %v1589
  %v1591 = vrot.slane %v1590, 2
  %v1592 = vmax.f32 %v1590, %v1591
  %v1593 = vrot.slane %v1592, 1
  %v1594 = vmax.f32 %v1592, %v1593
  %v1595 = vrot.slane %v1483, 4
  %v1596 = vmax.f32 %v1483, %v1595
  %v1597 = vrot.slane %v1596, 2
  %v1598 = vmax.f32 %v1596, %v1597
  %v1599 = vrot.slane %v1598, 1
  %v1600 = vmax.f32 %v1598, %v1599
  %v1601 = vrot.slane %v1484, 4
  %v1602 = vmax.f32 %v1484, %v1601
  %v1603 = vrot.slane %v1602, 2
  %v1604 = vmax.f32 %v1602, %v1603
  %v1605 = vrot.slane %v1604, 1
  %v1606 = vmax.f32 %v1604, %v1605
  %v1607 = vrot.slane %v1485, 4
  %v1608 = vmax.f32 %v1485, %v1607
  %v1609 = vrot.slane %v1608, 2
  %v1610 = vmax.f32 %v1608, %v1609
  %v1611 = vrot.slane %v1610, 1
  %v1612 = vmax.f32 %v1610, %v1611
  %v1613 = vrot.slane %v1486, 4
  %v1614 = vmax.f32 %v1486, %v1613
  %v1615 = vrot.slane %v1614, 2
  %v1616 = vmax.f32 %v1614, %v1615
  %v1617 = vrot.slane %v1616, 1
  %v1618 = vmax.f32 %v1616, %v1617
  %v1619 = vrot.slane %v1487, 4
  %v1620 = vmax.f32 %v1487, %v1619
  %v1621 = vrot.slane %v1620, 2
  %v1622 = vmax.f32 %v1620, %v1621
  %v1623 = vrot.slane %v1622, 1
  %v1624 = vmax.f32 %v1622, %v1623
  %v1625 = vrot.slane %v1488, 4
  %v1626 = vmax.f32 %v1488, %v1625
  %v1627 = vrot.slane %v1626, 2
  %v1628 = vmax.f32 %v1626, %v1627
  %v1629 = vrot.slane %v1628, 1
  %v1630 = vmax.f32 %v1628, %v1629
  %v1631 = vrot.slane %v1489, 4
  %v1632 = vmax.f32 %v1489, %v1631
  %v1633 = vrot.slane %v1632, 2
  %v1634 = vmax.f32 %v1632, %v1633
  %v1635 = vrot.slane %v1634, 1
  %v1636 = vmax.f32 %v1634, %v1635
  %v1637 = vrot.slane %v1490, 4
  %v1638 = vmax.f32 %v1490, %v1637
  %v1639 = vrot.slane %v1638, 2
  %v1640 = vmax.f32 %v1638, %v1639
  %v1641 = vrot.slane %v1640, 1
  %v1642 = vmax.f32 %v1640, %v1641
  %v1643 = vrot.slane %v1491, 4
  %v1644 = vmax.f32 %v1491, %v1643
  %v1645 = vrot.slane %v1644, 2
  %v1646 = vmax.f32 %v1644, %v1645
  %v1647 = vrot.slane %v1646, 1
  %v1648 = vmax.f32 %v1646, %v1647
  %v1649 = vrot.slane %v1492, 4
  %v1650 = vmax.f32 %v1492, %v1649
  %v1651 = vrot.slane %v1650, 2
  %v1652 = vmax.f32 %v1650, %v1651
  %v1653 = vrot.slane %v1652, 1
  %v1654 = vmax.f32 %v1652, %v1653
  %v1655 = vrot.slane %v1493, 4
  %v1656 = vmax.f32 %v1493, %v1655
  %v1657 = vrot.slane %v1656, 2
  %v1658 = vmax.f32 %v1656, %v1657
  %v1659 = vrot.slane %v1658, 1
  %v1660 = vmax.f32 %v1658, %v1659
  %v1661 = vrot.slane %v1494, 4
  %v1662 = vmax.f32 %v1494, %v1661
  %v1663 = vrot.slane %v1662, 2
  %v1664 = vmax.f32 %v1662, %v1663
  %v1665 = vrot.slane %v1664, 1
  %v1666 = vmax.f32 %v1664, %v1665
  %v1667 = vrot.slane %v1495, 4
  %v1668 = vmax.f32 %v1495, %v1667
  %v1669 = vrot.slane %v1668, 2
  %v1670 = vmax.f32 %v1668, %v1669
  %v1671 = vrot.slane %v1670, 1
  %v1672 = vmax.f32 %v1670, %v1671
  %v1673 = vrot.slane %v1496, 4
  %v1674 = vmax.f32 %v1496, %v1673
  %v1675 = vrot.slane %v1674, 2
  %v1676 = vmax.f32 %v1674, %v1675
  %v1677 = vrot.slane %v1676, 1
  %v1678 = vmax.f32 %v1676, %v1677
  %v1679 = vrot.slane %v1497, 4
  %v1680 = vmax.f32 %v1497, %v1679
  %v1681 = vrot.slane %v1680, 2
  %v1682 = vmax.f32 %v1680, %v1681
  %v1683 = vrot.slane %v1682, 1
  %v1684 = vmax.f32 %v1682, %v1683
  %v1685 = vrot.slane %v1498, 4
  %v1686 = vmax.f32 %v1498, %v1685
  %v1687 = vrot.slane %v1686, 2
  %v1688 = vmax.f32 %v1686, %v1687
  %v1689 = vrot.slane %v1688, 1
  %v1690 = vmax.f32 %v1688, %v1689
  %v1691 = vsub.f32 %v1467, %v1504
  %v1692 = vsub.f32 %v1468, %v1510
  %v1693 = vsub.f32 %v1469, %v1516
  %v1694 = vsub.f32 %v1470, %v1522
  %v1695 = vsub.f32 %v1471, %v1528
  %v1696 = vsub.f32 %v1472, %v1534
  %v1697 = vsub.f32 %v1473, %v1540
  %v1698 = vsub.f32 %v1474, %v1546
  %v1699 = vsub.f32 %v1475, %v1552
  %v1700 = vsub.f32 %v1476, %v1558
  %v1701 = vsub.f32 %v1477, %v1564
  %v1702 = vsub.f32 %v1478, %v1570
  %v1703 = vsub.f32 %v1479, %v1576
  %v1704 = vsub.f32 %v1480, %v1582
  %v1705 = vsub.f32 %v1481, %v1588
  %v1706 = vsub.f32 %v1482, %v1594
  %v1707 = vsub.f32 %v1483, %v1600
  %v1708 = vsub.f32 %v1484, %v1606
  %v1709 = vsub.f32 %v1485, %v1612
  %v1710 = vsub.f32 %v1486, %v1618
  %v1711 = vsub.f32 %v1487, %v1624
  %v1712 = vsub.f32 %v1488, %v1630
  %v1713 = vsub.f32 %v1489, %v1636
  %v1714 = vsub.f32 %v1490, %v1642
  %v1715 = vsub.f32 %v1491, %v1648
  %v1716 = vsub.f32 %v1492, %v1654
  %v1717 = vsub.f32 %v1493, %v1660
  %v1718 = vsub.f32 %v1494, %v1666
  %v1719 = vsub.f32 %v1495, %v1672
  %v1720 = vsub.f32 %v1496, %v1678
  %v1721 = vsub.f32 %v1497, %v1684
  %v1722 = vsub.f32 %v1498, %v1690
  %v1723 = vmul.f32 %v1691, 1.442695
  %v1724 = vpow.pop %v1723
  %v1725 = vmul.f32 %v1692, 1.442695
  %v1726 = vpow.pop %v1725
  %v1727 = vmul.f32 %v1693, 1.442695
  %v1728 = vpow.pop %v1727
  %v1729 = vmul.f32 %v1694, 1.442695
  %v1730 = vpow.pop %v1729
  %v1731 = vmul.f32 %v1695, 1.442695
  %v1732 = vpow.pop %v1731
  %v1733 = vmul.f32 %v1696, 1.442695
  %v1734 = vpow.pop %v1733
  %v1735 = vmul.f32 %v1697, 1.442695
  %v1736 = vpow.pop %v1735
  %v1737 = vmul.f32 %v1698, 1.442695
  %v1738 = vpow.pop %v1737
  %v1739 = vmul.f32 %v1699, 1.442695
  %v1740 = vpow.pop %v1739
  %v1741 = vmul.f32 %v1700, 1.442695
  %v1742 = vpow.pop %v1741
  %v1743 = vmul.f32 %v1701, 1.442695
  %v1744 = vpow.pop %v1743
  %v1745 = vmul.f32 %v1702, 1.442695
  %v1746 = vpow.pop %v1745
  %v1747 = vmul.f32 %v1703, 1.442695
  %v1748 = vpow.pop %v1747
  %v1749 = vmul.f32 %v1704, 1.442695
  %v1750 = vpow.pop %v1749
  %v1751 = vmul.f32 %v1705, 1.442695
  %v1752 = vpow.pop %v1751
  %v1753 = vmul.f32 %v1706, 1.442695
  %v1754 = vpow.pop %v1753
  %v1755 = vmul.f32 %v1707, 1.442695
  %v1756 = vpow.pop %v1755
  %v1757 = vmul.f32 %v1708, 1.442695
  %v1758 = vpow.pop %v1757
  %v1759 = vmul.f32 %v1709, 1.442695
  %v1760 = vpow.pop %v1759
  %v1761 = vmul.f32 %v1710, 1.442695
  %v1762 = vpow.pop %v1761
  %v1763 = vmul.f32 %v1711, 1.442695
  %v1764 = vpow.pop %v1763
  %v1765 = vmul.f32 %v1712, 1.442695
  %v1766 = vpow.pop %v1765
  %v1767 = vmul.f32 %v1713, 1.442695
  %v1768 = vpow.pop %v1767
  %v1769 = vmul.f32 %v1714, 1.442695
  %v1770 = vpow.pop %v1769
  %v1771 = vmul.f32 %v1715, 1.442695
  %v1772 = vpow.pop %v1771
  %v1773 = vmul.f32 %v1716, 1.442695
  %v1774 = vpow.pop %v1773
  %v1775 = vmul.f32 %v1717, 1.442695
  %v1776 = vpow.pop %v1775
  %v1777 = vmul.f32 %v1718, 1.442695
  %v1778 = vpow.pop %v1777
  %v1779 = vmul.f32 %v1719, 1.442695
  %v1780 = vpow.pop %v1779
  %v1781 = vmul.f32 %v1720, 1.442695
  %v1782 = vpow.pop %v1781
  %v1783 = vmul.f32 %v1721, 1.442695
  %v1784 = vpow.pop %v1783
  %v1785 = vmul.f32 %v1722, 1.442695
  %v1786 = vpow.pop %v1785
  %v1787 = vperm.slane %v616, 0
  %v1788 = vlaneseq
  %v1789 = vshrl.u32 %v1788, 7
  %1791 = vset.pattern.permute.xlu0 %v1789
  %1792 = vperm.xlu0 %1791, %v1787
  %v1793 = vpop.permute.xlu0 %1792
  %v1794 = vperm.slane %v616, 1
  %v1795 = vlaneseq
  %v1796 = vshrl.u32 %v1795, 7
  %1798 = vset.pattern.permute.xlu0 %v1796
  %1799 = vperm.xlu0 %1798, %v1794
  %v1800 = vpop.permute.xlu0 %1799
  %v1801 = vperm.slane %v616, 2
  %v1802 = vlaneseq
  %v1803 = vshrl.u32 %v1802, 7
  %1805 = vset.pattern.permute.xlu0 %v1803
  %1806 = vperm.xlu0 %1805, %v1801
  %v1807 = vpop.permute.xlu0 %1806
  %v1808 = vperm.slane %v616, 3
  %v1809 = vlaneseq
  %v1810 = vshrl.u32 %v1809, 7
  %1812 = vset.pattern.permute.xlu0 %v1810
  %1813 = vperm.xlu0 %1812, %v1808
  %v1814 = vpop.permute.xlu0 %1813
  %v1815 = vperm.slane %v616, 4
  %v1816 = vlaneseq
  %v1817 = vshrl.u32 %v1816, 7
  %1819 = vset.pattern.permute.xlu0 %v1817
  %1820 = vperm.xlu0 %1819, %v1815
  %v1821 = vpop.permute.xlu0 %1820
  %v1822 = vperm.slane %v616, 5
  %v1823 = vlaneseq
  %v1824 = vshrl.u32 %v1823, 7
  %1826 = vset.pattern.permute.xlu0 %v1824
  %1827 = vperm.xlu0 %1826, %v1822
  %v1828 = vpop.permute.xlu0 %1827
  %v1829 = vperm.slane %v616, 6
  %v1830 = vlaneseq
  %v1831 = vshrl.u32 %v1830, 7
  %1833 = vset.pattern.permute.xlu0 %v1831
  %1834 = vperm.xlu0 %1833, %v1829
  %v1835 = vpop.permute.xlu0 %1834
  %v1836 = vperm.slane %v616, 7
  %v1837 = vlaneseq
  %v1838 = vshrl.u32 %v1837, 7
  %1840 = vset.pattern.permute.xlu0 %v1838
  %1841 = vperm.xlu0 %1840, %v1836
  %v1842 = vpop.permute.xlu0 %1841
  %v1843 = vperm.slane %v617, 0
  %v1844 = vlaneseq
  %v1845 = vshrl.u32 %v1844, 7
  %1847 = vset.pattern.permute.xlu0 %v1845
  %1848 = vperm.xlu0 %1847, %v1843
  %v1849 = vpop.permute.xlu0 %1848
  %v1850 = vperm.slane %v617, 1
  %v1851 = vlaneseq
  %v1852 = vshrl.u32 %v1851, 7
  %1854 = vset.pattern.permute.xlu0 %v1852
  %1855 = vperm.xlu0 %1854, %v1850
  %v1856 = vpop.permute.xlu0 %1855
  %v1857 = vperm.slane %v617, 2
  %v1858 = vlaneseq
  %v1859 = vshrl.u32 %v1858, 7
  %1861 = vset.pattern.permute.xlu0 %v1859
  %1862 = vperm.xlu0 %1861, %v1857
  %v1863 = vpop.permute.xlu0 %1862
  %v1864 = vperm.slane %v617, 3
  %v1865 = vlaneseq
  %v1866 = vshrl.u32 %v1865, 7
  %1868 = vset.pattern.permute.xlu0 %v1866
  %1869 = vperm.xlu0 %1868, %v1864
  %v1870 = vpop.permute.xlu0 %1869
  %v1871 = vperm.slane %v617, 4
  %v1872 = vlaneseq
  %v1873 = vshrl.u32 %v1872, 7
  %1875 = vset.pattern.permute.xlu0 %v1873
  %1876 = vperm.xlu0 %1875, %v1871
  %v1877 = vpop.permute.xlu0 %1876
  %v1878 = vperm.slane %v617, 5
  %v1879 = vlaneseq
  %v1880 = vshrl.u32 %v1879, 7
  %1882 = vset.pattern.permute.xlu0 %v1880
  %1883 = vperm.xlu0 %1882, %v1878
  %v1884 = vpop.permute.xlu0 %1883
  %v1885 = vperm.slane %v617, 6
  %v1886 = vlaneseq
  %v1887 = vshrl.u32 %v1886, 7
  %1889 = vset.pattern.permute.xlu0 %v1887
  %1890 = vperm.xlu0 %1889, %v1885
  %v1891 = vpop.permute.xlu0 %1890
  %v1892 = vperm.slane %v617, 7
  %v1893 = vlaneseq
  %v1894 = vshrl.u32 %v1893, 7
  %1896 = vset.pattern.permute.xlu0 %v1894
  %1897 = vperm.xlu0 %1896, %v1892
  %v1898 = vpop.permute.xlu0 %1897
  %v1899 = vperm.slane %v618, 0
  %v1900 = vlaneseq
  %v1901 = vshrl.u32 %v1900, 7
  %1903 = vset.pattern.permute.xlu0 %v1901
  %1904 = vperm.xlu0 %1903, %v1899
  %v1905 = vpop.permute.xlu0 %1904
  %v1906 = vperm.slane %v618, 1
  %v1907 = vlaneseq
  %v1908 = vshrl.u32 %v1907, 7
  %1910 = vset.pattern.permute.xlu0 %v1908
  %1911 = vperm.xlu0 %1910, %v1906
  %v1912 = vpop.permute.xlu0 %1911
  %v1913 = vperm.slane %v618, 2
  %v1914 = vlaneseq
  %v1915 = vshrl.u32 %v1914, 7
  %1917 = vset.pattern.permute.xlu0 %v1915
  %1918 = vperm.xlu0 %1917, %v1913
  %v1919 = vpop.permute.xlu0 %1918
  %v1920 = vperm.slane %v618, 3
  %v1921 = vlaneseq
  %v1922 = vshrl.u32 %v1921, 7
  %1924 = vset.pattern.permute.xlu0 %v1922
  %1925 = vperm.xlu0 %1924, %v1920
  %v1926 = vpop.permute.xlu0 %1925
  %v1927 = vperm.slane %v618, 4
  %v1928 = vlaneseq
  %v1929 = vshrl.u32 %v1928, 7
  %1931 = vset.pattern.permute.xlu0 %v1929
  %1932 = vperm.xlu0 %1931, %v1927
  %v1933 = vpop.permute.xlu0 %1932
  %v1934 = vperm.slane %v618, 5
  %v1935 = vlaneseq
  %v1936 = vshrl.u32 %v1935, 7
  %1938 = vset.pattern.permute.xlu0 %v1936
  %1939 = vperm.xlu0 %1938, %v1934
  %v1940 = vpop.permute.xlu0 %1939
  %v1941 = vperm.slane %v618, 6
  %v1942 = vlaneseq
  %v1943 = vshrl.u32 %v1942, 7
  %1945 = vset.pattern.permute.xlu0 %v1943
  %1946 = vperm.xlu0 %1945, %v1941
  %v1947 = vpop.permute.xlu0 %1946
  %v1948 = vperm.slane %v618, 7
  %v1949 = vlaneseq
  %v1950 = vshrl.u32 %v1949, 7
  %1952 = vset.pattern.permute.xlu0 %v1950
  %1953 = vperm.xlu0 %1952, %v1948
  %v1954 = vpop.permute.xlu0 %1953
  %v1955 = vperm.slane %v619, 0
  %v1956 = vlaneseq
  %v1957 = vshrl.u32 %v1956, 7
  %1959 = vset.pattern.permute.xlu0 %v1957
  %1960 = vperm.xlu0 %1959, %v1955
  %v1961 = vpop.permute.xlu0 %1960
  %v1962 = vperm.slane %v619, 1
  %v1963 = vlaneseq
  %v1964 = vshrl.u32 %v1963, 7
  %1966 = vset.pattern.permute.xlu0 %v1964
  %1967 = vperm.xlu0 %1966, %v1962
  %v1968 = vpop.permute.xlu0 %1967
  %v1969 = vperm.slane %v619, 2
  %v1970 = vlaneseq
  %v1971 = vshrl.u32 %v1970, 7
  %1973 = vset.pattern.permute.xlu0 %v1971
  %1974 = vperm.xlu0 %1973, %v1969
  %v1975 = vpop.permute.xlu0 %1974
  %v1976 = vperm.slane %v619, 3
  %v1977 = vlaneseq
  %v1978 = vshrl.u32 %v1977, 7
  %1980 = vset.pattern.permute.xlu0 %v1978
  %1981 = vperm.xlu0 %1980, %v1976
  %v1982 = vpop.permute.xlu0 %1981
  %v1983 = vperm.slane %v619, 4
  %v1984 = vlaneseq
  %v1985 = vshrl.u32 %v1984, 7
  %1987 = vset.pattern.permute.xlu0 %v1985
  %1988 = vperm.xlu0 %1987, %v1983
  %v1989 = vpop.permute.xlu0 %1988
  %v1990 = vperm.slane %v619, 5
  %v1991 = vlaneseq
  %v1992 = vshrl.u32 %v1991, 7
  %1994 = vset.pattern.permute.xlu0 %v1992
  %1995 = vperm.xlu0 %1994, %v1990
  %v1996 = vpop.permute.xlu0 %1995
  %v1997 = vperm.slane %v619, 6
  %v1998 = vlaneseq
  %v1999 = vshrl.u32 %v1998, 7
  %2001 = vset.pattern.permute.xlu0 %v1999
  %2002 = vperm.xlu0 %2001, %v1997
  %v2003 = vpop.permute.xlu0 %2002
  %v2004 = vperm.slane %v619, 7
  %v2005 = vlaneseq
  %v2006 = vshrl.u32 %v2005, 7
  %2008 = vset.pattern.permute.xlu0 %v2006
  %2009 = vperm.xlu0 %2008, %v2004
  %v2010 = vpop.permute.xlu0 %2009
  %v2011 = vmul.f32 %v1724, %v1793
  %v2012 = vmul.f32 %v1726, %v1800
  %v2013 = vmul.f32 %v1728, %v1807
  %v2014 = vmul.f32 %v1730, %v1814
  %v2015 = vmul.f32 %v1732, %v1821
  %v2016 = vmul.f32 %v1734, %v1828
  %v2017 = vmul.f32 %v1736, %v1835
  %v2018 = vmul.f32 %v1738, %v1842
  %v2019 = vmul.f32 %v1740, %v1849
  %v2020 = vmul.f32 %v1742, %v1856
  %v2021 = vmul.f32 %v1744, %v1863
  %v2022 = vmul.f32 %v1746, %v1870
  %v2023 = vmul.f32 %v1748, %v1877
  %v2024 = vmul.f32 %v1750, %v1884
  %v2025 = vmul.f32 %v1752, %v1891
  %v2026 = vmul.f32 %v1754, %v1898
  %v2027 = vmul.f32 %v1756, %v1905
  %v2028 = vmul.f32 %v1758, %v1912
  %v2029 = vmul.f32 %v1760, %v1919
  %v2030 = vmul.f32 %v1762, %v1926
  %v2031 = vmul.f32 %v1764, %v1933
  %v2032 = vmul.f32 %v1766, %v1940
  %v2033 = vmul.f32 %v1768, %v1947
  %v2034 = vmul.f32 %v1770, %v1954
  %v2035 = vmul.f32 %v1772, %v1961
  %v2036 = vmul.f32 %v1774, %v1968
  %v2037 = vmul.f32 %v1776, %v1975
  %v2038 = vmul.f32 %v1778, %v1982
  %v2039 = vmul.f32 %v1780, %v1989
  %v2040 = vmul.f32 %v1782, %v1996
  %v2041 = vmul.f32 %v1784, %v2003
  %v2042 = vmul.f32 %v1786, %v2010
  %v2043 = vrot.slane %v2011, 4
  %v2044 = vadd.f32 %v2011, %v2043
  %v2045 = vrot.slane %v2044, 2
  %v2046 = vadd.f32 %v2044, %v2045
  %v2047 = vrot.slane %v2046, 1
  %v2048 = vadd.f32 %v2046, %v2047
  %v2049 = vrot.slane %v2012, 4
  %v2050 = vadd.f32 %v2012, %v2049
  %v2051 = vrot.slane %v2050, 2
  %v2052 = vadd.f32 %v2050, %v2051
  %v2053 = vrot.slane %v2052, 1
  %v2054 = vadd.f32 %v2052, %v2053
  %v2055 = vrot.slane %v2013, 4
  %v2056 = vadd.f32 %v2013, %v2055
  %v2057 = vrot.slane %v2056, 2
  %v2058 = vadd.f32 %v2056, %v2057
  %v2059 = vrot.slane %v2058, 1
  %v2060 = vadd.f32 %v2058, %v2059
  %v2061 = vrot.slane %v2014, 4
  %v2062 = vadd.f32 %v2014, %v2061
  %v2063 = vrot.slane %v2062, 2
  %v2064 = vadd.f32 %v2062, %v2063
  %v2065 = vrot.slane %v2064, 1
  %v2066 = vadd.f32 %v2064, %v2065
  %v2067 = vrot.slane %v2015, 4
  %v2068 = vadd.f32 %v2015, %v2067
  %v2069 = vrot.slane %v2068, 2
  %v2070 = vadd.f32 %v2068, %v2069
  %v2071 = vrot.slane %v2070, 1
  %v2072 = vadd.f32 %v2070, %v2071
  %v2073 = vrot.slane %v2016, 4
  %v2074 = vadd.f32 %v2016, %v2073
  %v2075 = vrot.slane %v2074, 2
  %v2076 = vadd.f32 %v2074, %v2075
  %v2077 = vrot.slane %v2076, 1
  %v2078 = vadd.f32 %v2076, %v2077
  %v2079 = vrot.slane %v2017, 4
  %v2080 = vadd.f32 %v2017, %v2079
  %v2081 = vrot.slane %v2080, 2
  %v2082 = vadd.f32 %v2080, %v2081
  %v2083 = vrot.slane %v2082, 1
  %v2084 = vadd.f32 %v2082, %v2083
  %v2085 = vrot.slane %v2018, 4
  %v2086 = vadd.f32 %v2018, %v2085
  %v2087 = vrot.slane %v2086, 2
  %v2088 = vadd.f32 %v2086, %v2087
  %v2089 = vrot.slane %v2088, 1
  %v2090 = vadd.f32 %v2088, %v2089
  %v2091 = vrot.slane %v2019, 4
  %v2092 = vadd.f32 %v2019, %v2091
  %v2093 = vrot.slane %v2092, 2
  %v2094 = vadd.f32 %v2092, %v2093
  %v2095 = vrot.slane %v2094, 1
  %v2096 = vadd.f32 %v2094, %v2095
  %v2097 = vrot.slane %v2020, 4
  %v2098 = vadd.f32 %v2020, %v2097
  %v2099 = vrot.slane %v2098, 2
  %v2100 = vadd.f32 %v2098, %v2099
  %v2101 = vrot.slane %v2100, 1
  %v2102 = vadd.f32 %v2100, %v2101
  %v2103 = vrot.slane %v2021, 4
  %v2104 = vadd.f32 %v2021, %v2103
  %v2105 = vrot.slane %v2104, 2
  %v2106 = vadd.f32 %v2104, %v2105
  %v2107 = vrot.slane %v2106, 1
  %v2108 = vadd.f32 %v2106, %v2107
  %v2109 = vrot.slane %v2022, 4
  %v2110 = vadd.f32 %v2022, %v2109
  %v2111 = vrot.slane %v2110, 2
  %v2112 = vadd.f32 %v2110, %v2111
  %v2113 = vrot.slane %v2112, 1
  %v2114 = vadd.f32 %v2112, %v2113
  %v2115 = vrot.slane %v2023, 4
  %v2116 = vadd.f32 %v2023, %v2115
  %v2117 = vrot.slane %v2116, 2
  %v2118 = vadd.f32 %v2116, %v2117
  %v2119 = vrot.slane %v2118, 1
  %v2120 = vadd.f32 %v2118, %v2119
  %v2121 = vrot.slane %v2024, 4
  %v2122 = vadd.f32 %v2024, %v2121
  %v2123 = vrot.slane %v2122, 2
  %v2124 = vadd.f32 %v2122, %v2123
  %v2125 = vrot.slane %v2124, 1
  %v2126 = vadd.f32 %v2124, %v2125
  %v2127 = vrot.slane %v2025, 4
  %v2128 = vadd.f32 %v2025, %v2127
  %v2129 = vrot.slane %v2128, 2
  %v2130 = vadd.f32 %v2128, %v2129
  %v2131 = vrot.slane %v2130, 1
  %v2132 = vadd.f32 %v2130, %v2131
  %v2133 = vrot.slane %v2026, 4
  %v2134 = vadd.f32 %v2026, %v2133
  %v2135 = vrot.slane %v2134, 2
  %v2136 = vadd.f32 %v2134, %v2135
  %v2137 = vrot.slane %v2136, 1
  %v2138 = vadd.f32 %v2136, %v2137
  %v2139 = vrot.slane %v2027, 4
  %v2140 = vadd.f32 %v2027, %v2139
  %v2141 = vrot.slane %v2140, 2
  %v2142 = vadd.f32 %v2140, %v2141
  %v2143 = vrot.slane %v2142, 1
  %v2144 = vadd.f32 %v2142, %v2143
  %v2145 = vrot.slane %v2028, 4
  %v2146 = vadd.f32 %v2028, %v2145
  %v2147 = vrot.slane %v2146, 2
  %v2148 = vadd.f32 %v2146, %v2147
  %v2149 = vrot.slane %v2148, 1
  %v2150 = vadd.f32 %v2148, %v2149
  %v2151 = vrot.slane %v2029, 4
  %v2152 = vadd.f32 %v2029, %v2151
  %v2153 = vrot.slane %v2152, 2
  %v2154 = vadd.f32 %v2152, %v2153
  %v2155 = vrot.slane %v2154, 1
  %v2156 = vadd.f32 %v2154, %v2155
  %v2157 = vrot.slane %v2030, 4
  %v2158 = vadd.f32 %v2030, %v2157
  %v2159 = vrot.slane %v2158, 2
  %v2160 = vadd.f32 %v2158, %v2159
  %v2161 = vrot.slane %v2160, 1
  %v2162 = vadd.f32 %v2160, %v2161
  %v2163 = vrot.slane %v2031, 4
  %v2164 = vadd.f32 %v2031, %v2163
  %v2165 = vrot.slane %v2164, 2
  %v2166 = vadd.f32 %v2164, %v2165
  %v2167 = vrot.slane %v2166, 1
  %v2168 = vadd.f32 %v2166, %v2167
  %v2169 = vrot.slane %v2032, 4
  %v2170 = vadd.f32 %v2032, %v2169
  %v2171 = vrot.slane %v2170, 2
  %v2172 = vadd.f32 %v2170, %v2171
  %v2173 = vrot.slane %v2172, 1
  %v2174 = vadd.f32 %v2172, %v2173
  %v2175 = vrot.slane %v2033, 4
  %v2176 = vadd.f32 %v2033, %v2175
  %v2177 = vrot.slane %v2176, 2
  %v2178 = vadd.f32 %v2176, %v2177
  %v2179 = vrot.slane %v2178, 1
  %v2180 = vadd.f32 %v2178, %v2179
  %v2181 = vrot.slane %v2034, 4
  %v2182 = vadd.f32 %v2034, %v2181
  %v2183 = vrot.slane %v2182, 2
  %v2184 = vadd.f32 %v2182, %v2183
  %v2185 = vrot.slane %v2184, 1
  %v2186 = vadd.f32 %v2184, %v2185
  %v2187 = vrot.slane %v2035, 4
  %v2188 = vadd.f32 %v2035, %v2187
  %v2189 = vrot.slane %v2188, 2
  %v2190 = vadd.f32 %v2188, %v2189
  %v2191 = vrot.slane %v2190, 1
  %v2192 = vadd.f32 %v2190, %v2191
  %v2193 = vrot.slane %v2036, 4
  %v2194 = vadd.f32 %v2036, %v2193
  %v2195 = vrot.slane %v2194, 2
  %v2196 = vadd.f32 %v2194, %v2195
  %v2197 = vrot.slane %v2196, 1
  %v2198 = vadd.f32 %v2196, %v2197
  %v2199 = vrot.slane %v2037, 4
  %v2200 = vadd.f32 %v2037, %v2199
  %v2201 = vrot.slane %v2200, 2
  %v2202 = vadd.f32 %v2200, %v2201
  %v2203 = vrot.slane %v2202, 1
  %v2204 = vadd.f32 %v2202, %v2203
  %v2205 = vrot.slane %v2038, 4
  %v2206 = vadd.f32 %v2038, %v2205
  %v2207 = vrot.slane %v2206, 2
  %v2208 = vadd.f32 %v2206, %v2207
  %v2209 = vrot.slane %v2208, 1
  %v2210 = vadd.f32 %v2208, %v2209
  %v2211 = vrot.slane %v2039, 4
  %v2212 = vadd.f32 %v2039, %v2211
  %v2213 = vrot.slane %v2212, 2
  %v2214 = vadd.f32 %v2212, %v2213
  %v2215 = vrot.slane %v2214, 1
  %v2216 = vadd.f32 %v2214, %v2215
  %v2217 = vrot.slane %v2040, 4
  %v2218 = vadd.f32 %v2040, %v2217
  %v2219 = vrot.slane %v2218, 2
  %v2220 = vadd.f32 %v2218, %v2219
  %v2221 = vrot.slane %v2220, 1
  %v2222 = vadd.f32 %v2220, %v2221
  %v2223 = vrot.slane %v2041, 4
  %v2224 = vadd.f32 %v2041, %v2223
  %v2225 = vrot.slane %v2224, 2
  %v2226 = vadd.f32 %v2224, %v2225
  %v2227 = vrot.slane %v2226, 1
  %v2228 = vadd.f32 %v2226, %v2227
  %v2229 = vrot.slane %v2042, 4
  %v2230 = vadd.f32 %v2042, %v2229
  %v2231 = vrot.slane %v2230, 2
  %v2232 = vadd.f32 %v2230, %v2231
  %v2233 = vrot.slane %v2232, 1
  %v2234 = vadd.f32 %v2232, %v2233
  %v2235 = vadd.f32 %v2048, 1e-15
  %v2236 = vadd.f32 %v2054, 1e-15
  %v2237 = vadd.f32 %v2060, 1e-15
  %v2238 = vadd.f32 %v2066, 1e-15
  %v2239 = vadd.f32 %v2072, 1e-15
  %v2240 = vadd.f32 %v2078, 1e-15
  %v2241 = vadd.f32 %v2084, 1e-15
  %v2242 = vadd.f32 %v2090, 1e-15
  %v2243 = vadd.f32 %v2096, 1e-15
  %v2244 = vadd.f32 %v2102, 1e-15
  %v2245 = vadd.f32 %v2108, 1e-15
  %v2246 = vadd.f32 %v2114, 1e-15
  %v2247 = vadd.f32 %v2120, 1e-15
  %v2248 = vadd.f32 %v2126, 1e-15
  %v2249 = vadd.f32 %v2132, 1e-15
  %v2250 = vadd.f32 %v2138, 1e-15
  %v2251 = vadd.f32 %v2144, 1e-15
  %v2252 = vadd.f32 %v2150, 1e-15
  %v2253 = vadd.f32 %v2156, 1e-15
  %v2254 = vadd.f32 %v2162, 1e-15
  %v2255 = vadd.f32 %v2168, 1e-15
  %v2256 = vadd.f32 %v2174, 1e-15
  %v2257 = vadd.f32 %v2180, 1e-15
  %v2258 = vadd.f32 %v2186, 1e-15
  %v2259 = vadd.f32 %v2192, 1e-15
  %v2260 = vadd.f32 %v2198, 1e-15
  %v2261 = vadd.f32 %v2204, 1e-15
  %v2262 = vadd.f32 %v2210, 1e-15
  %v2263 = vadd.f32 %v2216, 1e-15
  %v2264 = vadd.f32 %v2222, 1e-15
  %v2265 = vadd.f32 %v2228, 1e-15
  %v2266 = vadd.f32 %v2234, 1e-15
  %v2267 = vrcp.pop %v2235
  %v2268 = vrcp.pop %v2236
  %v2269 = vrcp.pop %v2237
  %v2270 = vrcp.pop %v2238
  %v2271 = vrcp.pop %v2239
  %v2272 = vrcp.pop %v2240
  %v2273 = vrcp.pop %v2241
  %v2274 = vrcp.pop %v2242
  %v2275 = vrcp.pop %v2243
  %v2276 = vrcp.pop %v2244
  %v2277 = vrcp.pop %v2245
  %v2278 = vrcp.pop %v2246
  %v2279 = vrcp.pop %v2247
  %v2280 = vrcp.pop %v2248
  %v2281 = vrcp.pop %v2249
  %v2282 = vrcp.pop %v2250
  %v2283 = vrcp.pop %v2251
  %v2284 = vrcp.pop %v2252
  %v2285 = vrcp.pop %v2253
  %v2286 = vrcp.pop %v2254
  %v2287 = vrcp.pop %v2255
  %v2288 = vrcp.pop %v2256
  %v2289 = vrcp.pop %v2257
  %v2290 = vrcp.pop %v2258
  %v2291 = vrcp.pop %v2259
  %v2292 = vrcp.pop %v2260
  %v2293 = vrcp.pop %v2261
  %v2294 = vrcp.pop %v2262
  %v2295 = vrcp.pop %v2263
  %v2296 = vrcp.pop %v2264
  %v2297 = vrcp.pop %v2265
  %v2298 = vrcp.pop %v2266
  %v2299 = vmul.f32 %v2011, %v2267
  %v2300 = vmul.f32 %v2012, %v2268
  %v2301 = vmul.f32 %v2013, %v2269
  %v2302 = vmul.f32 %v2014, %v2270
  %v2303 = vmul.f32 %v2015, %v2271
  %v2304 = vmul.f32 %v2016, %v2272
  %v2305 = vmul.f32 %v2017, %v2273
  %v2306 = vmul.f32 %v2018, %v2274
  %v2307 = vmul.f32 %v2019, %v2275
  %v2308 = vmul.f32 %v2020, %v2276
  %v2309 = vmul.f32 %v2021, %v2277
  %v2310 = vmul.f32 %v2022, %v2278
  %v2311 = vmul.f32 %v2023, %v2279
  %v2312 = vmul.f32 %v2024, %v2280
  %v2313 = vmul.f32 %v2025, %v2281
  %v2314 = vmul.f32 %v2026, %v2282
  %v2315 = vmul.f32 %v2027, %v2283
  %v2316 = vmul.f32 %v2028, %v2284
  %v2317 = vmul.f32 %v2029, %v2285
  %v2318 = vmul.f32 %v2030, %v2286
  %v2319 = vmul.f32 %v2031, %v2287
  %v2320 = vmul.f32 %v2032, %v2288
  %v2321 = vmul.f32 %v2033, %v2289
  %v2322 = vmul.f32 %v2034, %v2290
  %v2323 = vmul.f32 %v2035, %v2291
  %v2324 = vmul.f32 %v2036, %v2292
  %v2325 = vmul.f32 %v2037, %v2293
  %v2326 = vmul.f32 %v2038, %v2294
  %v2327 = vmul.f32 %v2039, %v2295
  %v2328 = vmul.f32 %v2040, %v2296
  %v2329 = vmul.f32 %v2041, %v2297
  %v2330 = vmul.f32 %v2042, %v2298
  %v2331 = vmul.f32 %v1246, %v2299
  %v2332 = vmul.f32 %v1247, %v2300
  %v2333 = vmul.f32 %v1248, %v2301
  %v2334 = vmul.f32 %v1249, %v2302
  %v2335 = vmul.f32 %v1250, %v2303
  %v2336 = vmul.f32 %v1251, %v2304
  %v2337 = vmul.f32 %v1252, %v2305
  %v2338 = vmul.f32 %v1253, %v2306
  %v2339 = vmul.f32 %v1254, %v2307
  %v2340 = vmul.f32 %v1255, %v2308
  %v2341 = vmul.f32 %v1256, %v2309
  %v2342 = vmul.f32 %v1257, %v2310
  %v2343 = vmul.f32 %v1258, %v2311
  %v2344 = vmul.f32 %v1259, %v2312
  %v2345 = vmul.f32 %v1260, %v2313
  %v2346 = vmul.f32 %v1261, %v2314
  %v2347 = vmul.f32 %v1262, %v2315
  %v2348 = vmul.f32 %v1263, %v2316
  %v2349 = vmul.f32 %v1264, %v2317
  %v2350 = vmul.f32 %v1265, %v2318
  %v2351 = vmul.f32 %v1266, %v2319
  %v2352 = vmul.f32 %v1267, %v2320
  %v2353 = vmul.f32 %v1268, %v2321
  %v2354 = vmul.f32 %v1269, %v2322
  %v2355 = vmul.f32 %v1270, %v2323
  %v2356 = vmul.f32 %v1271, %v2324
  %v2357 = vmul.f32 %v1272, %v2325
  %v2358 = vmul.f32 %v1273, %v2326
  %v2359 = vmul.f32 %v1274, %v2327
  %v2360 = vmul.f32 %v1275, %v2328
  %v2361 = vmul.f32 %v1276, %v2329
  %v2362 = vmul.f32 %v1277, %v2330
  %v2363 = vrot.slane %v2331, 4
  %v2364 = vadd.f32 %v2331, %v2363
  %v2365 = vrot.slane %v2364, 2
  %v2366 = vadd.f32 %v2364, %v2365
  %v2367 = vrot.slane %v2366, 1
  %v2368 = vadd.f32 %v2366, %v2367
  %v2369 = vrot.slane %v2332, 4
  %v2370 = vadd.f32 %v2332, %v2369
  %v2371 = vrot.slane %v2370, 2
  %v2372 = vadd.f32 %v2370, %v2371
  %v2373 = vrot.slane %v2372, 1
  %v2374 = vadd.f32 %v2372, %v2373
  %v2375 = vrot.slane %v2333, 4
  %v2376 = vadd.f32 %v2333, %v2375
  %v2377 = vrot.slane %v2376, 2
  %v2378 = vadd.f32 %v2376, %v2377
  %v2379 = vrot.slane %v2378, 1
  %v2380 = vadd.f32 %v2378, %v2379
  %v2381 = vrot.slane %v2334, 4
  %v2382 = vadd.f32 %v2334, %v2381
  %v2383 = vrot.slane %v2382, 2
  %v2384 = vadd.f32 %v2382, %v2383
  %v2385 = vrot.slane %v2384, 1
  %v2386 = vadd.f32 %v2384, %v2385
  %v2387 = vrot.slane %v2335, 4
  %v2388 = vadd.f32 %v2335, %v2387
  %v2389 = vrot.slane %v2388, 2
  %v2390 = vadd.f32 %v2388, %v2389
  %v2391 = vrot.slane %v2390, 1
  %v2392 = vadd.f32 %v2390, %v2391
  %v2393 = vrot.slane %v2336, 4
  %v2394 = vadd.f32 %v2336, %v2393
  %v2395 = vrot.slane %v2394, 2
  %v2396 = vadd.f32 %v2394, %v2395
  %v2397 = vrot.slane %v2396, 1
  %v2398 = vadd.f32 %v2396, %v2397
  %v2399 = vrot.slane %v2337, 4
  %v2400 = vadd.f32 %v2337, %v2399
  %v2401 = vrot.slane %v2400, 2
  %v2402 = vadd.f32 %v2400, %v2401
  %v2403 = vrot.slane %v2402, 1
  %v2404 = vadd.f32 %v2402, %v2403
  %v2405 = vrot.slane %v2338, 4
  %v2406 = vadd.f32 %v2338, %v2405
  %v2407 = vrot.slane %v2406, 2
  %v2408 = vadd.f32 %v2406, %v2407
  %v2409 = vrot.slane %v2408, 1
  %v2410 = vadd.f32 %v2408, %v2409
  %v2411 = vrot.slane %v2339, 4
  %v2412 = vadd.f32 %v2339, %v2411
  %v2413 = vrot.slane %v2412, 2
  %v2414 = vadd.f32 %v2412, %v2413
  %v2415 = vrot.slane %v2414, 1
  %v2416 = vadd.f32 %v2414, %v2415
  %v2417 = vrot.slane %v2340, 4
  %v2418 = vadd.f32 %v2340, %v2417
  %v2419 = vrot.slane %v2418, 2
  %v2420 = vadd.f32 %v2418, %v2419
  %v2421 = vrot.slane %v2420, 1
  %v2422 = vadd.f32 %v2420, %v2421
  %v2423 = vrot.slane %v2341, 4
  %v2424 = vadd.f32 %v2341, %v2423
  %v2425 = vrot.slane %v2424, 2
  %v2426 = vadd.f32 %v2424, %v2425
  %v2427 = vrot.slane %v2426, 1
  %v2428 = vadd.f32 %v2426, %v2427
  %v2429 = vrot.slane %v2342, 4
  %v2430 = vadd.f32 %v2342, %v2429
  %v2431 = vrot.slane %v2430, 2
  %v2432 = vadd.f32 %v2430, %v2431
  %v2433 = vrot.slane %v2432, 1
  %v2434 = vadd.f32 %v2432, %v2433
  %v2435 = vrot.slane %v2343, 4
  %v2436 = vadd.f32 %v2343, %v2435
  %v2437 = vrot.slane %v2436, 2
  %v2438 = vadd.f32 %v2436, %v2437
  %v2439 = vrot.slane %v2438, 1
  %v2440 = vadd.f32 %v2438, %v2439
  %v2441 = vrot.slane %v2344, 4
  %v2442 = vadd.f32 %v2344, %v2441
  %v2443 = vrot.slane %v2442, 2
  %v2444 = vadd.f32 %v2442, %v2443
  %v2445 = vrot.slane %v2444, 1
  %v2446 = vadd.f32 %v2444, %v2445
  %v2447 = vrot.slane %v2345, 4
  %v2448 = vadd.f32 %v2345, %v2447
  %v2449 = vrot.slane %v2448, 2
  %v2450 = vadd.f32 %v2448, %v2449
  %v2451 = vrot.slane %v2450, 1
  %v2452 = vadd.f32 %v2450, %v2451
  %v2453 = vrot.slane %v2346, 4
  %v2454 = vadd.f32 %v2346, %v2453
  %v2455 = vrot.slane %v2454, 2
  %v2456 = vadd.f32 %v2454, %v2455
  %v2457 = vrot.slane %v2456, 1
  %v2458 = vadd.f32 %v2456, %v2457
  %v2459 = vrot.slane %v2347, 4
  %v2460 = vadd.f32 %v2347, %v2459
  %v2461 = vrot.slane %v2460, 2
  %v2462 = vadd.f32 %v2460, %v2461
  %v2463 = vrot.slane %v2462, 1
  %v2464 = vadd.f32 %v2462, %v2463
  %v2465 = vrot.slane %v2348, 4
  %v2466 = vadd.f32 %v2348, %v2465
  %v2467 = vrot.slane %v2466, 2
  %v2468 = vadd.f32 %v2466, %v2467
  %v2469 = vrot.slane %v2468, 1
  %v2470 = vadd.f32 %v2468, %v2469
  %v2471 = vrot.slane %v2349, 4
  %v2472 = vadd.f32 %v2349, %v2471
  %v2473 = vrot.slane %v2472, 2
  %v2474 = vadd.f32 %v2472, %v2473
  %v2475 = vrot.slane %v2474, 1
  %v2476 = vadd.f32 %v2474, %v2475
  %v2477 = vrot.slane %v2350, 4
  %v2478 = vadd.f32 %v2350, %v2477
  %v2479 = vrot.slane %v2478, 2
  %v2480 = vadd.f32 %v2478, %v2479
  %v2481 = vrot.slane %v2480, 1
  %v2482 = vadd.f32 %v2480, %v2481
  %v2483 = vrot.slane %v2351, 4
  %v2484 = vadd.f32 %v2351, %v2483
  %v2485 = vrot.slane %v2484, 2
  %v2486 = vadd.f32 %v2484, %v2485
  %v2487 = vrot.slane %v2486, 1
  %v2488 = vadd.f32 %v2486, %v2487
  %v2489 = vrot.slane %v2352, 4
  %v2490 = vadd.f32 %v2352, %v2489
  %v2491 = vrot.slane %v2490, 2
  %v2492 = vadd.f32 %v2490, %v2491
  %v2493 = vrot.slane %v2492, 1
  %v2494 = vadd.f32 %v2492, %v2493
  %v2495 = vrot.slane %v2353, 4
  %v2496 = vadd.f32 %v2353, %v2495
  %v2497 = vrot.slane %v2496, 2
  %v2498 = vadd.f32 %v2496, %v2497
  %v2499 = vrot.slane %v2498, 1
  %v2500 = vadd.f32 %v2498, %v2499
  %v2501 = vrot.slane %v2354, 4
  %v2502 = vadd.f32 %v2354, %v2501
  %v2503 = vrot.slane %v2502, 2
  %v2504 = vadd.f32 %v2502, %v2503
  %v2505 = vrot.slane %v2504, 1
  %v2506 = vadd.f32 %v2504, %v2505
  %v2507 = vrot.slane %v2355, 4
  %v2508 = vadd.f32 %v2355, %v2507
  %v2509 = vrot.slane %v2508, 2
  %v2510 = vadd.f32 %v2508, %v2509
  %v2511 = vrot.slane %v2510, 1
  %v2512 = vadd.f32 %v2510, %v2511
  %v2513 = vrot.slane %v2356, 4
  %v2514 = vadd.f32 %v2356, %v2513
  %v2515 = vrot.slane %v2514, 2
  %v2516 = vadd.f32 %v2514, %v2515
  %v2517 = vrot.slane %v2516, 1
  %v2518 = vadd.f32 %v2516, %v2517
  %v2519 = vrot.slane %v2357, 4
  %v2520 = vadd.f32 %v2357, %v2519
  %v2521 = vrot.slane %v2520, 2
  %v2522 = vadd.f32 %v2520, %v2521
  %v2523 = vrot.slane %v2522, 1
  %v2524 = vadd.f32 %v2522, %v2523
  %v2525 = vrot.slane %v2358, 4
  %v2526 = vadd.f32 %v2358, %v2525
  %v2527 = vrot.slane %v2526, 2
  %v2528 = vadd.f32 %v2526, %v2527
  %v2529 = vrot.slane %v2528, 1
  %v2530 = vadd.f32 %v2528, %v2529
  %v2531 = vrot.slane %v2359, 4
  %v2532 = vadd.f32 %v2359, %v2531
  %v2533 = vrot.slane %v2532, 2
  %v2534 = vadd.f32 %v2532, %v2533
  %v2535 = vrot.slane %v2534, 1
  %v2536 = vadd.f32 %v2534, %v2535
  %v2537 = vrot.slane %v2360, 4
  %v2538 = vadd.f32 %v2360, %v2537
  %v2539 = vrot.slane %v2538, 2
  %v2540 = vadd.f32 %v2538, %v2539
  %v2541 = vrot.slane %v2540, 1
  %v2542 = vadd.f32 %v2540, %v2541
  %v2543 = vrot.slane %v2361, 4
  %v2544 = vadd.f32 %v2361, %v2543
  %v2545 = vrot.slane %v2544, 2
  %v2546 = vadd.f32 %v2544, %v2545
  %v2547 = vrot.slane %v2546, 1
  %v2548 = vadd.f32 %v2546, %v2547
  %v2549 = vrot.slane %v2362, 4
  %v2550 = vadd.f32 %v2362, %v2549
  %v2551 = vrot.slane %v2550, 2
  %v2552 = vadd.f32 %v2550, %v2551
  %v2553 = vrot.slane %v2552, 1
  %v2554 = vadd.f32 %v2552, %v2553
  %v2555 = vld [vmem:[%s6] sm:$0x7]
  %v2572 = vsel %vm535, %v2374, %v2368
  %v2573 = vsel %vm537, %v2380, %v2572
  %v2574 = vsel %vm539, %v2386, %v2573
  %v2575 = vsel %vm541, %v2392, %v2574
  %v2576 = vsel %vm543, %v2398, %v2575
  %v2577 = vsel %vm545, %v2404, %v2576
  %v2578 = vsel %vm547, %v2410, %v2577
  %v2579 = vsel %vm535, %v2422, %v2416
  %v2580 = vsel %vm537, %v2428, %v2579
  %v2581 = vsel %vm539, %v2434, %v2580
  %v2582 = vsel %vm541, %v2440, %v2581
  %v2583 = vsel %vm543, %v2446, %v2582
  %v2584 = vsel %vm545, %v2452, %v2583
  %v2585 = vsel %vm547, %v2458, %v2584
  %v2588 = vmul.f32 %v1280, %v2578
  %v2589 = vmul.f32 %v1281, %v2585
  %v2606 = vsel %vm535, %v2470, %v2464
  %v2607 = vsel %vm537, %v2476, %v2606
  %v2608 = vsel %vm539, %v2482, %v2607
  %v2609 = vsel %vm541, %v2488, %v2608
  %v2610 = vsel %vm543, %v2494, %v2609
  %v2611 = vsel %vm545, %v2500, %v2610
  %v2612 = vsel %vm547, %v2506, %v2611
  %v2613 = vsel %vm535, %v2518, %v2512
  %v2614 = vsel %vm537, %v2524, %v2613
  %v2615 = vsel %vm539, %v2530, %v2614
  %v2616 = vsel %vm541, %v2536, %v2615
  %v2617 = vsel %vm543, %v2542, %v2616
  %v2618 = vsel %vm545, %v2548, %v2617
  %v2619 = vsel %vm547, %v2554, %v2618
  %v2622 = vmul.f32 %v1280, %v2612
  %v2623 = vmul.f32 %v1281, %v2619
  %v2624 = vpack.c.bf16 %v1281, %v1280
  %v2625 = vpack.c.bf16 %v2585, %v2578
  %v2626 = vpack.c.bf16 %v2619, %v2612
  %v2627 = vpack.c.bf16 %v2589, %v2588
  %v2628 = vpack.c.bf16 %v2623, %v2622
  %v2629 = vld [vmem:[%s5] sm:$0xf]
  %v2630 = vld [vmem:[%s5 + $0x4] sm:$0xf]
  %v2631 = vld [vmem:[%s5 + $0x8] sm:$0xf]
  %v2632 = vld [vmem:[%s5 + $0xc] sm:$0xf]
  %v2633 = vld [vmem:[%s5 + $0x10] sm:$0xf]
  %v2634 = vld [vmem:[%s5 + $0x14] sm:$0xf]
  %v2635 = vld [vmem:[%s5 + $0x18] sm:$0xf]
  %v2636 = vld [vmem:[%s5 + $0x1c] sm:$0xf]
  %v2637 = vld [vmem:[%s5 + $0x20] sm:$0xf]
  %v2638 = vld [vmem:[%s5 + $0x24] sm:$0xf]
  %v2639 = vld [vmem:[%s5 + $0x28] sm:$0xf]
  %v2640 = vld [vmem:[%s5 + $0x2c] sm:$0xf]
  %v2641 = vld [vmem:[%s5 + $0x30] sm:$0xf]
  %v2642 = vld [vmem:[%s5 + $0x34] sm:$0xf]
  %v2643 = vld [vmem:[%s5 + $0x38] sm:$0xf]
  %v2644 = vld [vmem:[%s5 + $0x3c] sm:$0xf]
  %v2645 = vld [vmem:[%s5 + $0x40] sm:$0xf]
  %v2646 = vld [vmem:[%s5 + $0x44] sm:$0xf]
  %v2647 = vld [vmem:[%s5 + $0x48] sm:$0xf]
  %v2648 = vld [vmem:[%s5 + $0x4c] sm:$0xf]
  %v2649 = vld [vmem:[%s5 + $0x50] sm:$0xf]
  %v2650 = vld [vmem:[%s5 + $0x54] sm:$0xf]
  %v2651 = vld [vmem:[%s5 + $0x58] sm:$0xf]
  %v2652 = vld [vmem:[%s5 + $0x5c] sm:$0xf]
  %v2653 = vld [vmem:[%s5 + $0x60] sm:$0xf]
  %v2654 = vld [vmem:[%s5 + $0x64] sm:$0xf]
  %v2655 = vld [vmem:[%s5 + $0x68] sm:$0xf]
  %v2656 = vld [vmem:[%s5 + $0x6c] sm:$0xf]
  %v2657 = vld [vmem:[%s5 + $0x70] sm:$0xf]
  %v2658 = vld [vmem:[%s5 + $0x74] sm:$0xf]
  %v2659 = vld [vmem:[%s5 + $0x78] sm:$0xf]
  %v2660 = vld [vmem:[%s5 + $0x7c] sm:$0xf]
  %v2661 = vld [vmem:[%s5 + $0x80] sm:$0xf]
  %v2662 = vld [vmem:[%s5 + $0x84] sm:$0xf]
  %v2663 = vld [vmem:[%s5 + $0x88] sm:$0xf]
  %v2664 = vld [vmem:[%s5 + $0x8c] sm:$0xf]
  %v2665 = vld [vmem:[%s5 + $0x90] sm:$0xf]
  %v2666 = vld [vmem:[%s5 + $0x94] sm:$0xf]
  %v2667 = vld [vmem:[%s5 + $0x98] sm:$0xf]
  %v2668 = vld [vmem:[%s5 + $0x9c] sm:$0xf]
  %v2669 = vld [vmem:[%s5 + $0xa0] sm:$0xf]
  %v2670 = vld [vmem:[%s5 + $0xa4] sm:$0xf]
  %v2671 = vld [vmem:[%s5 + $0xa8] sm:$0xf]
  %v2672 = vld [vmem:[%s5 + $0xac] sm:$0xf]
  %v2673 = vld [vmem:[%s5 + $0xb0] sm:$0xf]
  %v2674 = vld [vmem:[%s5 + $0xb4] sm:$0xf]
  %v2675 = vld [vmem:[%s5 + $0xb8] sm:$0xf]
  %v2676 = vld [vmem:[%s5 + $0xbc] sm:$0xf]
  %v2677 = vld [vmem:[%s5 + $0xc0] sm:$0xf]
  %v2678 = vld [vmem:[%s5 + $0xc4] sm:$0xf]
  %v2679 = vld [vmem:[%s5 + $0xc8] sm:$0xf]
  %v2680 = vld [vmem:[%s5 + $0xcc] sm:$0xf]
  %v2681 = vld [vmem:[%s5 + $0xd0] sm:$0xf]
  %v2682 = vld [vmem:[%s5 + $0xd4] sm:$0xf]
  %v2683 = vld [vmem:[%s5 + $0xd8] sm:$0xf]
  %v2684 = vld [vmem:[%s5 + $0xdc] sm:$0xf]
  %v2685 = vld [vmem:[%s5 + $0xe0] sm:$0xf]
  %v2686 = vld [vmem:[%s5 + $0xe4] sm:$0xf]
  %v2687 = vld [vmem:[%s5 + $0xe8] sm:$0xf]
  %v2688 = vld [vmem:[%s5 + $0xec] sm:$0xf]
  %v2689 = vld [vmem:[%s5 + $0xf0] sm:$0xf]
  %v2690 = vld [vmem:[%s5 + $0xf4] sm:$0xf]
  %v2691 = vld [vmem:[%s5 + $0xf8] sm:$0xf]
  %v2692 = vld [vmem:[%s5 + $0xfc] sm:$0xf]
  %v2693 = vld [vmem:[%s5 + $0x100] sm:$0xf]
  %v2694 = vld [vmem:[%s5 + $0x104] sm:$0xf]
  %v2695 = vld [vmem:[%s5 + $0x108] sm:$0xf]
  %v2696 = vld [vmem:[%s5 + $0x10c] sm:$0xf]
  %v2697 = vld [vmem:[%s5 + $0x110] sm:$0xf]
  %v2698 = vld [vmem:[%s5 + $0x114] sm:$0xf]
  %v2699 = vld [vmem:[%s5 + $0x118] sm:$0xf]
  %v2700 = vld [vmem:[%s5 + $0x11c] sm:$0xf]
  %v2701 = vld [vmem:[%s5 + $0x120] sm:$0xf]
  %v2702 = vld [vmem:[%s5 + $0x124] sm:$0xf]
  %v2703 = vld [vmem:[%s5 + $0x128] sm:$0xf]
  %v2704 = vld [vmem:[%s5 + $0x12c] sm:$0xf]
  %v2705 = vld [vmem:[%s5 + $0x130] sm:$0xf]
  %v2706 = vld [vmem:[%s5 + $0x134] sm:$0xf]
  %v2707 = vld [vmem:[%s5 + $0x138] sm:$0xf]
  %v2708 = vld [vmem:[%s5 + $0x13c] sm:$0xf]
  %v2709 = vperm.slane %v2555, 0
  %v2790 = vunpack.c.l.b16 %v2629
  %v2791 = vunpack.c.l.b16 %v2630
  %v2792 = vunpack.c.l.b16 %v2631
  %v2793 = vunpack.c.l.b16 %v2632
  %v2794 = vunpack.c.l.b16 %v2633
  %v2795 = vunpack.c.l.b16 %v2634
  %v2796 = vunpack.c.l.b16 %v2635
  %v2797 = vunpack.c.l.b16 %v2636
  %v2798 = vunpack.c.l.b16 %v2637
  %v2799 = vunpack.c.l.b16 %v2638
  %v2800 = vunpack.c.l.b16 %v2639
  %v2801 = vunpack.c.l.b16 %v2640
  %v2802 = vunpack.c.l.b16 %v2641
  %v2803 = vunpack.c.l.b16 %v2642
  %v2804 = vunpack.c.l.b16 %v2643
  %v2805 = vunpack.c.l.b16 %v2644
  %v2806 = vunpack.c.l.b16 %v2645
  %v2807 = vunpack.c.l.b16 %v2646
  %v2808 = vunpack.c.l.b16 %v2647
  %v2809 = vunpack.c.l.b16 %v2648
  %v2810 = vunpack.c.l.b16 %v2649
  %v2811 = vunpack.c.l.b16 %v2650
  %v2812 = vunpack.c.l.b16 %v2651
  %v2813 = vunpack.c.l.b16 %v2652
  %v2814 = vunpack.c.l.b16 %v2653
  %v2815 = vunpack.c.l.b16 %v2654
  %v2816 = vunpack.c.l.b16 %v2655
  %v2817 = vunpack.c.l.b16 %v2656
  %v2818 = vunpack.c.l.b16 %v2657
  %v2819 = vunpack.c.l.b16 %v2658
  %v2820 = vunpack.c.l.b16 %v2659
  %v2821 = vunpack.c.l.b16 %v2660
  %v2822 = vunpack.c.l.b16 %v2661
  %v2823 = vunpack.c.l.b16 %v2662
  %v2824 = vunpack.c.l.b16 %v2663
  %v2825 = vunpack.c.l.b16 %v2664
  %v2826 = vunpack.c.l.b16 %v2665
  %v2827 = vunpack.c.l.b16 %v2666
  %v2828 = vunpack.c.l.b16 %v2667
  %v2829 = vunpack.c.l.b16 %v2668
  %v2830 = vunpack.c.l.b16 %v2669
  %v2831 = vunpack.c.l.b16 %v2670
  %v2832 = vunpack.c.l.b16 %v2671
  %v2833 = vunpack.c.l.b16 %v2672
  %v2834 = vunpack.c.l.b16 %v2673
  %v2835 = vunpack.c.l.b16 %v2674
  %v2836 = vunpack.c.l.b16 %v2675
  %v2837 = vunpack.c.l.b16 %v2676
  %v2838 = vunpack.c.l.b16 %v2677
  %v2839 = vunpack.c.l.b16 %v2678
  %v2840 = vunpack.c.l.b16 %v2679
  %v2841 = vunpack.c.l.b16 %v2680
  %v2842 = vunpack.c.l.b16 %v2681
  %v2843 = vunpack.c.l.b16 %v2682
  %v2844 = vunpack.c.l.b16 %v2683
  %v2845 = vunpack.c.l.b16 %v2684
  %v2846 = vunpack.c.l.b16 %v2685
  %v2847 = vunpack.c.l.b16 %v2686
  %v2848 = vunpack.c.l.b16 %v2687
  %v2849 = vunpack.c.l.b16 %v2688
  %v2850 = vunpack.c.l.b16 %v2689
  %v2851 = vunpack.c.l.b16 %v2690
  %v2852 = vunpack.c.l.b16 %v2691
  %v2853 = vunpack.c.l.b16 %v2692
  %v2854 = vunpack.c.l.b16 %v2693
  %v2855 = vunpack.c.l.b16 %v2694
  %v2856 = vunpack.c.l.b16 %v2695
  %v2857 = vunpack.c.l.b16 %v2696
  %v2858 = vunpack.c.l.b16 %v2697
  %v2859 = vunpack.c.l.b16 %v2698
  %v2860 = vunpack.c.l.b16 %v2699
  %v2861 = vunpack.c.l.b16 %v2700
  %v2862 = vunpack.c.l.b16 %v2701
  %v2863 = vunpack.c.l.b16 %v2702
  %v2864 = vunpack.c.l.b16 %v2703
  %v2865 = vunpack.c.l.b16 %v2704
  %v2866 = vunpack.c.l.b16 %v2705
  %v2867 = vunpack.c.l.b16 %v2706
  %v2868 = vunpack.c.l.b16 %v2707
  %v2869 = vunpack.c.l.b16 %v2708
  %v2870 = vpack.c.b16 %v2791, %v2790
  %v2871 = vpack.c.b16 %v2793, %v2792
  %v2872 = vpack.c.b16 %v2795, %v2794
  %v2873 = vpack.c.b16 %v2797, %v2796
  %v2874 = vpack.c.b16 %v2799, %v2798
  %v2875 = vpack.c.b16 %v2801, %v2800
  %v2876 = vpack.c.b16 %v2803, %v2802
  %v2877 = vpack.c.b16 %v2805, %v2804
  %v2878 = vpack.c.b16 %v2807, %v2806
  %v2879 = vpack.c.b16 %v2809, %v2808
  %v2880 = vpack.c.b16 %v2811, %v2810
  %v2881 = vpack.c.b16 %v2813, %v2812
  %v2882 = vpack.c.b16 %v2815, %v2814
  %v2883 = vpack.c.b16 %v2817, %v2816
  %v2884 = vpack.c.b16 %v2819, %v2818
  %v2885 = vpack.c.b16 %v2821, %v2820
  %v2886 = vpack.c.b16 %v2823, %v2822
  %v2887 = vpack.c.b16 %v2825, %v2824
  %v2888 = vpack.c.b16 %v2827, %v2826
  %v2889 = vpack.c.b16 %v2829, %v2828
  %v2890 = vpack.c.b16 %v2831, %v2830
  %v2891 = vpack.c.b16 %v2833, %v2832
  %v2892 = vpack.c.b16 %v2835, %v2834
  %v2893 = vpack.c.b16 %v2837, %v2836
  %v2894 = vpack.c.b16 %v2839, %v2838
  %v2895 = vpack.c.b16 %v2841, %v2840
  %v2896 = vpack.c.b16 %v2843, %v2842
  %v2897 = vpack.c.b16 %v2845, %v2844
  %v2898 = vpack.c.b16 %v2847, %v2846
  %v2899 = vpack.c.b16 %v2849, %v2848
  %v2900 = vpack.c.b16 %v2851, %v2850
  %v2901 = vpack.c.b16 %v2853, %v2852
  %v2902 = vpack.c.b16 %v2855, %v2854
  %v2903 = vpack.c.b16 %v2857, %v2856
  %v2904 = vpack.c.b16 %v2859, %v2858
  %v2905 = vpack.c.b16 %v2861, %v2860
  %v2906 = vpack.c.b16 %v2863, %v2862
  %v2907 = vpack.c.b16 %v2865, %v2864
  %v2908 = vpack.c.b16 %v2867, %v2866
  %v2909 = vpack.c.b16 %v2869, %v2868
  %2950 = vmatpush.bf16.msra.mxu0 %v2877
  %2951 = vmatpush.bf16.msra.mxu0 %v2876
  %2952 = vmatpush.bf16.msra.mxu0 %v2875
  %2953 = vmatpush.bf16.msra.mxu0 %v2874
  %2954 = vmatpush.bf16.msra.mxu0 %v2873
  %2955 = vmatpush.bf16.msra.mxu0 %v2872
  %2956 = vmatpush.bf16.msra.mxu0 %v2871
  %2957 = vmatpush.bf16.msra.mxu0 %v2870
  %2958 = vmatmul.bf16.gmra.mxu0 %v2624
  %v2959 = vpop.f32.mrf.mxu0
  %v2960 = vadd.f32 %v2709, %v2959
  %v2961 = vpop.f32.mrf.mxu0
  %v2962 = vadd.f32 %v2709, %v2961
  %2963 = vdwg.mxu0
  %2964 = vmatpush.bf16.msra.mxu0 %v2885
  %2965 = vmatpush.bf16.msra.mxu0 %v2884
  %2966 = vmatpush.bf16.msra.mxu0 %v2883
  %2967 = vmatpush.bf16.msra.mxu0 %v2882
  %2968 = vmatpush.bf16.msra.mxu0 %v2881
  %2969 = vmatpush.bf16.msra.mxu0 %v2880
  %2970 = vmatpush.bf16.msra.mxu0 %v2879
  %2971 = vmatpush.bf16.msra.mxu0 %v2878
  %2972 = vmatmul.bf16.gmra.mxu0 %v2625
  %v2973 = vpop.f32.mrf.mxu0
  %v2974 = vadd.f32 %v2960, %v2973
  %v2975 = vpop.f32.mrf.mxu0
  %v2976 = vadd.f32 %v2962, %v2975
  %2977 = vdwg.mxu0
  %2978 = vmatpush.bf16.msra.mxu0 %v2893
  %2979 = vmatpush.bf16.msra.mxu0 %v2892
  %2980 = vmatpush.bf16.msra.mxu0 %v2891
  %2981 = vmatpush.bf16.msra.mxu0 %v2890
  %2982 = vmatpush.bf16.msra.mxu0 %v2889
  %2983 = vmatpush.bf16.msra.mxu0 %v2888
  %2984 = vmatpush.bf16.msra.mxu0 %v2887
  %2985 = vmatpush.bf16.msra.mxu0 %v2886
  %2986 = vmatmul.bf16.gmra.mxu0 %v2626
  %v2987 = vpop.f32.mrf.mxu0
  %v2988 = vadd.f32 %v2974, %v2987
  %v2989 = vpop.f32.mrf.mxu0
  %v2990 = vadd.f32 %v2976, %v2989
  %2991 = vdwg.mxu0
  %2992 = vmatpush.bf16.msra.mxu0 %v2901
  %2993 = vmatpush.bf16.msra.mxu0 %v2900
  %2994 = vmatpush.bf16.msra.mxu0 %v2899
  %2995 = vmatpush.bf16.msra.mxu0 %v2898
  %2996 = vmatpush.bf16.msra.mxu0 %v2897
  %2997 = vmatpush.bf16.msra.mxu0 %v2896
  %2998 = vmatpush.bf16.msra.mxu0 %v2895
  %2999 = vmatpush.bf16.msra.mxu0 %v2894
  %3000 = vmatmul.bf16.gmra.mxu0 %v2627
  %v3001 = vpop.f32.mrf.mxu0
  %v3002 = vadd.f32 %v2988, %v3001
  %v3003 = vpop.f32.mrf.mxu0
  %v3004 = vadd.f32 %v2990, %v3003
  %3005 = vdwg.mxu0
  %3006 = vmatpush.bf16.msra.mxu0 %v2909
  %3007 = vmatpush.bf16.msra.mxu0 %v2908
  %3008 = vmatpush.bf16.msra.mxu0 %v2907
  %3009 = vmatpush.bf16.msra.mxu0 %v2906
  %3010 = vmatpush.bf16.msra.mxu0 %v2905
  %3011 = vmatpush.bf16.msra.mxu0 %v2904
  %3012 = vmatpush.bf16.msra.mxu0 %v2903
  %3013 = vmatpush.bf16.msra.mxu0 %v2902
  %3014 = vmatmul.bf16.gmra.mxu0 %v2628
  %v3015 = vpop.f32.mrf.mxu0
  %v3016 = vadd.f32 %v3002, %v3015
  %v3017 = vpop.f32.mrf.mxu0
  %v3018 = vadd.f32 %v3004, %v3017
  %3019 = vdwg.mxu0
  %v3020 = vperm.slane %v2555, 1
  %v3021 = vmul.f32 %v3016, %v3020
  %v3022 = vmul.f32 %v3018, %v3020
  %v3023 = vperm.slane %v2555, 2
  %v3024 = vadd.f32 %v3021, %v3023
  %v3025 = vadd.f32 %v3022, %v3023
  %v3026 = vmax.f32 %v3024, 0.0
  %v3027 = vmax.f32 %v3025, 0.0
  %v3028 = vld [vmem:[%s8] sm:$0xf]
  %v3029 = vld [vmem:[%s3] sm:$0xff]
  %v3030 = vld [vmem:[%s3 + $0x8] sm:$0xff]
  %v3032 = vrot.slane %v3028, 3
  %s3033 = vtos %v3032
  %v3034 = vstv %s3033
  %v3036 = vmul.f32 %v3029, %v3034
  %v3037 = vmul.f32 %v3030, %v3034
  %3038 = vrot.lane.b32.xlu0 %v3032, 127
  %v3039 = vpop.permute.xlu0 %3038
  %s3040 = vtos %v3039
  %v3041 = vstv %s3040
  %v3043 = vadd.f32 %v3036, %v3041
  %v3044 = vadd.f32 %v3037, %v3041
  %v3045 = vtanh.pop %v3043
  %v3046 = vtanh.pop %v3044
  %v3047 = vld [vmem:[%s7] sm:$0xff]
  %v3048 = vld [vmem:[%s7 + $0x8] sm:$0xff]
  %v3049 = vld [vmem:[%s7 + $0x10] sm:$0xff]
  %v3050 = vld [vmem:[%s7 + $0x18] sm:$0xff]
  %v3051 = vld [vmem:[%s7 + $0x20] sm:$0xff]
  %v3052 = vld [vmem:[%s7 + $0x28] sm:$0xff]
  %v3053 = vld [vmem:[%s7 + $0x30] sm:$0xff]
  %v3054 = vld [vmem:[%s7 + $0x38] sm:$0xff]
  %3056 = vset.pattern.permute.xlu0 0
  %3057 = vperm.xlu0 %3056, %v3045
  %v3058 = vpop.permute.xlu0 %3057
  %3061 = vset.pattern.permute.xlu0 0
  %3062 = vperm.xlu0 %3061, %v3046
  %v3063 = vpop.permute.xlu0 %3062
  %v3065 = vperm.slane %v3028, 0
  %v3066 = vmul.f32 %v3058, %v3065
  %v3067 = vmul.f32 %v3063, %v3065
  %vm3068 = vcmask 523264
  %v3070 = vsel %vm3068, %v3026, 0
  %v3073 = vsel %vm3068, %v3027, 0
  %3075 = vmatpush.msra.mxu0 0.0
  %3076 = vmatpush.msra.mxu0 0.0
  %3077 = vmatpush.msra.mxu0 0.0
  %3078 = vmatpush.msra.mxu0 0.0
  %3079 = vmatpush.msra.mxu0 0.0
  %3080 = vmatpush.msra.mxu0 0.0
  %3081 = vmatpush.msra.mxu0 0.0
  %3082 = vmatpush.msra.mxu0 0.0
  %3083 = vmatpush.msra.mxu0 %v3054
  %3084 = vmatpush.msra.mxu0 %v3053
  %3085 = vmatpush.msra.mxu0 %v3052
  %3086 = vmatpush.msra.mxu0 %v3051
  %3087 = vmatpush.msra.mxu0 %v3050
  %3088 = vmatpush.msra.mxu0 %v3049
  %3089 = vmatpush.msra.mxu0 %v3048
  %3090 = vmatpush.msra.mxu0 %v3047
  %3091 = vmatmul.f32.gmra.mxu0 %v3070
  %v3092 = vpop.f32.mrf.mxu0
  %v3093 = vadd.f32 %v3066, %v3092
  %3094 = vmatmul.f32.gmra.mxu0 %v3073
  %v3095 = vpop.f32.mrf.mxu0
  %v3096 = vadd.f32 %v3067, %v3095
  %3097 = vdwg.mxu0
  %3098 = vset.pattern.permute.xlu0 1
  %3099 = vperm.xlu0 %3098, %v3045
  %v3100 = vpop.permute.xlu0 %3099
  %3102 = vset.pattern.permute.xlu0 1
  %3103 = vperm.xlu0 %3102, %v3046
  %v3104 = vpop.permute.xlu0 %3103
  %v3106 = vperm.slane %v3028, 1
  %v3107 = vmul.f32 %v3100, %v3106
  %v3108 = vmul.f32 %v3104, %v3106
  %v3109 = vadd.f32 %v3093, %v3107
  %v3110 = vadd.f32 %v3096, %v3108
  %v3111 = vperm.slane %v3028, 2
  %v3112 = vadd.f32 %v3109, %v3111
  %v3113 = vadd.f32 %v3110, %v3111
  %vm3114 = vcmask 23552
  %3115 = vst.msk [vmem:[%s9] sm:$0xff] %vm3114, %v3112
  %3116 = vst.msk [vmem:[%s9 + $0x8] sm:$0xff] %vm3114, %v3113
  // Predicated region
  $region38: #{tpu_custom_call.1} parent=0 // pred_check
    _
  $region39: #{tpu_custom_call.1} parent=0 // pred_check_branch
    %3118 = sbr.rel (0) target = $region41
  $region40: #{tpu_custom_call.1} parent=0 // pred_region
    _
  $region41: #{tpu_custom_call.1} parent=0 // pred_fallthru
    _
  // Predicated region
  $region42: #{tpu_custom_call.1} parent=0 // pred_check
    _
  $region43: #{tpu_custom_call.1} parent=0 // pred_check_branch
    %3120 = sbr.rel (0) target = $region45
  $region44: #{tpu_custom_call.1} parent=0 // pred_region
    _
  $region45: #{tpu_custom_call.1} parent=0 // pred_fallthru
    _

</llo_original>
